<compile_context>
chip_gen: v7x
topology: tpu7x:2x2x1
jax: 0.10.0
libtpu: 0.0.40
codegen_flags: <defaults>
</compile_context>

<pallas_src>
import functools

import jax
import jax.numpy as jnp
from jax.experimental import pallas as pl
from jax.experimental.pallas import tpu as pltpu

LN_EPS = 1e-5  # torch.nn.LayerNorm default


def _layernorm(x, w, b):
    mean = jnp.mean(x, axis=-1, keepdims=True)
    cen = x - mean
    var = jnp.mean(cen * cen, axis=-1, keepdims=True)
    return cen * jax.lax.rsqrt(var + LN_EPS) * w + b


def _attention_and_output(Q, K, V, wo_ref, bo_ref, residual, o_ref, ctx_ref,
                          num_heads):
    """Per-head softmax attention + output projection + bias + residual.

    Q already carries the 1/sqrt(D//H) scale (folded into Wq by the wrapper).
    Per-head contexts go to the f32 VMEM scratch `ctx_ref` at static lane
    offsets (no lane-axis concatenate); a single full-contraction bf16 output
    projection follows.
    """
    D = Q.shape[-1]
    dh = D // num_heads
    bf16 = jnp.bfloat16
    for h in range(num_heads):  # static unroll; heads are contiguous D chunks
        lo = h * dh
        qh = Q[:, :, lo:lo + dh].astype(bf16)
        kh = K[:, :, lo:lo + dh].astype(bf16)
        vh = V[:, :, lo:lo + dh].astype(bf16)
        s = jnp.einsum('bqe,bke->bqk', qh, kh,
                       preferred_element_type=jnp.float32)
        m = jnp.max(s, axis=-1, keepdims=True)
        p = jnp.exp(s - m)
        denom = jnp.sum(p, axis=-1, keepdims=True)
        attw = (p * pl.reciprocal(denom, approx=True)).astype(bf16)
        ctx_ref[:, :, lo:lo + dh] = jnp.einsum(
            'bqk,bke->bqe', attw, vh, preferred_element_type=jnp.float32)

    out = jnp.einsum('bld,de->ble', ctx_ref[...].astype(bf16), wo_ref[...],
                     preferred_element_type=jnp.float32)
    # WO bias + residual; dropout / StochasticDepth are identities at inference.
    # TODO(synk): dropout / StochasticDepth with p > 0 (training) not implemented.
    out = out + bo_ref[...] + residual
    o_ref[...] = out.astype(o_ref.dtype)


def mha_self_kernel(x_ref, ln_w_ref, ln_b_ref, w_qkv_ref, wo_ref, bo_ref,
                    o_ref, ctx_ref, *, num_heads):
    """Self-attention fast path: LN once, one stacked (D, 3D) QKV projection."""
    x = x_ref[...].astype(jnp.float32)
    ln_w = ln_w_ref[...].astype(jnp.float32)
    ln_b = ln_b_ref[...].astype(jnp.float32)
    xn = _layernorm(x, ln_w, ln_b).astype(jnp.bfloat16)
    qkv = jnp.einsum('bld,de->ble', xn, w_qkv_ref[...],
                     preferred_element_type=jnp.float32)
    D = x.shape[-1]
    Q, K, V = qkv[:, :, :D], qkv[:, :, D:2 * D], qkv[:, :, 2 * D:]
    _attention_and_output(Q, K, V, wo_ref, bo_ref, x, o_ref, ctx_ref, num_heads)


def mha_cross_kernel(q_ref, k_ref, v_ref, ln_w_ref, ln_b_ref,
                     wq_ref, wk_ref, wv_ref, wo_ref, bo_ref,
                     o_ref, ctx_ref, *, num_heads):
    """General path: distinct q / k / v activations."""
    ln_w = ln_w_ref[...].astype(jnp.float32)
    ln_b = ln_b_ref[...].astype(jnp.float32)
    q = q_ref[...].astype(jnp.float32)
    k = k_ref[...].astype(jnp.float32)
    v = v_ref[...].astype(jnp.float32)
    bf16 = jnp.bfloat16
    Q = jnp.einsum('bld,de->ble', _layernorm(q, ln_w, ln_b).astype(bf16),
                   wq_ref[...], preferred_element_type=jnp.float32)
    K = jnp.einsum('bld,de->ble', _layernorm(k, ln_w, ln_b).astype(bf16),
                   wk_ref[...], preferred_element_type=jnp.float32)
    V = jnp.einsum('bld,de->ble', _layernorm(v, ln_w, ln_b).astype(bf16),
                   wv_ref[...], preferred_element_type=jnp.float32)
    _attention_and_output(Q, K, V, wo_ref, bo_ref, q, o_ref, ctx_ref, num_heads)


def _vmem_limit_bytes():
    cap = 64 * 1024 * 1024  # conservative default (v7x per-TC VMEM)
    try:
        cap = int(pltpu.get_tpu_info().vmem_capacity_bytes)
    except Exception:
        pass
    # ~75% of physical (96 MiB on 128 MiB parts, 48 MiB on v7x), capped.
    return max(16 * 1024 * 1024, min(int(cap * 0.75), 100 * 1024 * 1024))


def _pick_batch_tile(B, L, D, in_itemsize, n_act_inputs, budget_bytes):
    """Largest divisor of B whose per-step VMEM working set fits the budget.

    Counts double-buffered activation slabs (inputs + output, HBM dtype) plus
    the f32 in-kernel intermediates (LN'd activations, Q/K/V, ctx scratch,
    output) and the per-head score / prob tensors.
    """
    io_per_b = (n_act_inputs + 1) * 2 * L * D * in_itemsize
    interm_per_b = 8 * L * D * 4 + 3 * L * L * 4
    per_b = max(io_per_b + interm_per_b, 1)
    bt = max(1, min(B, budget_bytes // per_b))
    if B >= 2:
        # keep >= 2 grid steps so the 'parallel' axis can feed both v7x cores.
        bt = min(bt, max(1, B // 2))
    while B % bt:
        bt -= 1
    return bt


def _const_spec(shape, single_buffer):
    idx = lambda b: (0,) * len(shape)
    if single_buffer:
        # fetched once, never revisited -> no second pipeline buffer needed.
        return pl.BlockSpec(shape, idx, pipeline_mode=pl.Buffered(1))
    return pl.BlockSpec(shape, idx)


def multi_head_att(q, k, v, ln_w, ln_b, wq, wk, wv, wo, bo,
                   *, num_heads=1, batch_tile=None):
    """q/k/v: (B, L, D); ln_w/ln_b/bo: (D,); wq/wk/wv/wo: (D, D) torch (out, in)."""
    B, L, D = q.shape
    assert D % num_heads == 0, "emb_dim must be divisible by the number of heads"
    f32, bf16 = jnp.float32, jnp.bfloat16

    self_attn = (q is k) and (k is v)      # CCT calls forward(x, x, x)
    scale = float(D // num_heads) ** -0.5

    ln_w2 = ln_w.reshape(1, D).astype(f32)
    ln_b2 = ln_b.reshape(1, D).astype(f32)
    bo2 = bo.reshape(1, D).astype(f32)

    # Pre-transpose torch (out, in) weights to (in, out) once; fold the
    # attention scale into Wq; feed the MXU bf16 operands.
    wq_t = (wq.T * scale).astype(bf16)
    wk_t = wk.T.astype(bf16)
    wv_t = wv.T.astype(bf16)
    wo_t = wo.T.astype(bf16)
    w_qkv = jnp.concatenate([wq_t, wk_t, wv_t], axis=1) if self_attn else None

    vmem_limit = _vmem_limit_bytes()
    if self_attn:
        w_bytes = (3 * D * D + D * D) * 2 + 3 * D * 4
        n_act = 1
    else:
        w_bytes = 4 * D * D * 2 + 3 * D * 4
        n_act = 3
    budget = max(vmem_limit - 2 * w_bytes - (2 << 20), 4 << 20)
    bt = batch_tile if batch_tile is not None else _pick_batch_tile(
        B, L, D, q.dtype.itemsize, n_act, budget)
    grid = (B // bt,)

    cparams = pltpu.CompilerParams(
        dimension_semantics=("parallel",),
        vmem_limit_bytes=vmem_limit,
    )
    out_shape = jax.ShapeDtypeStruct((B, L, D), q.dtype)
    x_spec = pl.BlockSpec((bt, L, D), lambda b: (b, 0, 0))
    scratch = [pltpu.VMEM((bt, L, D), f32)]

    def _run(single_buffer):
        vec = _const_spec((1, D), single_buffer)
        mat = _const_spec((D, D), single_buffer)
        if self_attn:
            kern = functools.partial(mha_self_kernel, num_heads=num_heads)
            return pl.pallas_call(
                kern,
                out_shape=out_shape,
                grid_spec=pltpu.PrefetchScalarGridSpec(
                    num_scalar_prefetch=0,
                    grid=grid,
                    in_specs=[x_spec, vec, vec,
                              _const_spec((D, 3 * D), single_buffer), mat, vec],
                    out_specs=x_spec,
                    scratch_shapes=scratch,
                ),
                compiler_params=cparams,
            )(q, ln_w2, ln_b2, w_qkv, wo_t, bo2)
        kern = functools.partial(mha_cross_kernel, num_heads=num_heads)
        return pl.pallas_call(
            kern,
            out_shape=out_shape,
            grid_spec=pltpu.PrefetchScalarGridSpec(
                num_scalar_prefetch=0,
                grid=grid,
                in_specs=[x_spec, x_spec, x_spec, vec, vec,
                          mat, mat, mat, mat, vec],
                out_specs=x_spec,
                scratch_shapes=scratch,
            ),
            compiler_params=cparams,
        )(q, k, v, ln_w2, ln_b2, wq_t, wk_t, wv_t, wo_t, bo2)

    try:
        return _run(True)
    except Exception:
        # Fallback if single-buffered (pl.Buffered(1)) constant operands are
        # not supported by this jax version: use default double buffering.
        return _run(False)


def multi_head_att_ref(q, k, v, ln_w, ln_b, wq, wk, wv, wo, bo, num_heads):
    def ln(x):
        mean = jnp.mean(x, -1, keepdims=True)
        var = jnp.mean((x - mean) ** 2, -1, keepdims=True)
        return (x - mean) / jnp.sqrt(var + LN_EPS) * ln_w + ln_b

    qn, kn, vn = ln(q), ln(k), ln(v)
    Q, K, V = qn @ wq.T, kn @ wk.T, vn @ wv.T
    B, L, D = q.shape
    H, Dh = num_heads, D // num_heads
    Qh = Q.reshape(B, L, H, Dh).transpose(0, 2, 1, 3)
    Kh = K.reshape(B, L, H, Dh).transpose(0, 2, 1, 3)
    Vh = V.reshape(B, L, H, Dh).transpose(0, 2, 1, 3)
    scores = jnp.einsum('bhqe,bhke->bhqk', Qh, Kh) / jnp.sqrt(jnp.float32(Dh))
    attw = jax.nn.softmax(scores, axis=-1)
    ctx = jnp.einsum('bhqk,bhke->bhqe', attw, Vh)
    ctx = ctx.transpose(0, 2, 1, 3).reshape(B, L, D)
    return ctx @ wo.T + bo + q


if __name__ == "__main__":
    B, L, D = 2, 8, 128   # small but lane-dense (D is a multiple of 128)
    key = jax.random.PRNGKey(0)
    ks = jax.random.split(key, 10)

    q = jax.random.normal(ks[0], (B, L, D), dtype=jnp.float32)
    k = jax.random.normal(ks[1], (B, L, D), dtype=jnp.float32)
    v = jax.random.normal(ks[2], (B, L, D), dtype=jnp.float32)
    ln_w = 1.0 + 0.1 * jax.random.normal(ks[3], (D,), dtype=jnp.float32)
    ln_b = 0.1 * jax.random.normal(ks[4], (D,), dtype=jnp.float32)
    wq = jax.random.normal(ks[5], (D, D), dtype=jnp.float32) / jnp.sqrt(D)
    wk = jax.random.normal(ks[6], (D, D), dtype=jnp.float32) / jnp.sqrt(D)
    wv = jax.random.normal(ks[7], (D, D), dtype=jnp.float32) / jnp.sqrt(D)
    wo = jax.random.normal(ks[8], (D, D), dtype=jnp.float32) / jnp.sqrt(D)
    bo = 0.1 * jax.random.normal(ks[9], (D,), dtype=jnp.float32)

    ok = True
    for H in (1, 4):   # CCT default single head and a multi-head configuration
        # General (cross-attention) path.
        out = jax.block_until_ready(
            multi_head_att(q, k, v, ln_w, ln_b, wq, wk, wv, wo, bo, num_heads=H))
        ref = multi_head_att_ref(q, k, v, ln_w, ln_b, wq, wk, wv, wo, bo, H)
        max_err = float(jnp.max(jnp.abs(out - ref)))
        mean_err = float(jnp.mean(jnp.abs(out - ref)))
        ok = ok and out.shape == (B, L, D) and max_err < 1.5e-1 and mean_err < 3e-2

        # Self-attention fast path (CCT calls forward(x, x, x)).
        out_s = jax.block_until_ready(
            multi_head_att(q, q, q, ln_w, ln_b, wq, wk, wv, wo, bo, num_heads=H))
        ref_s = multi_head_att_ref(q, q, q, ln_w, ln_b, wq, wk, wv, wo, bo, H)
        max_err_s = float(jnp.max(jnp.abs(out_s - ref_s)))
        mean_err_s = float(jnp.mean(jnp.abs(out_s - ref_s)))
        ok = ok and out_s.shape == (B, L, D) and max_err_s < 1.5e-1 and mean_err_s < 3e-2

    assert ok
    print("KERNEL_OK")
</pallas_src>

<mosaic_0001>
module attributes {stable_mosaic.version = 11 : i64} {
  func.func @mha_cross_kernel(%arg0: i32, %arg1: memref<1x8x128xf32, #tpu.memory_space<vmem>>, %arg2: memref<1x8x128xf32, #tpu.memory_space<vmem>>, %arg3: memref<1x8x128xf32, #tpu.memory_space<vmem>>, %arg4: memref<1x128xf32, #tpu.memory_space<vmem>>, %arg5: memref<1x128xf32, #tpu.memory_space<vmem>>, %arg6: memref<128x128xbf16, #tpu.memory_space<vmem>>, %arg7: memref<128x128xbf16, #tpu.memory_space<vmem>>, %arg8: memref<128x128xbf16, #tpu.memory_space<vmem>>, %arg9: memref<128x128xbf16, #tpu.memory_space<vmem>>, %arg10: memref<1x128xf32, #tpu.memory_space<vmem>>, %arg11: memref<1x8x128xf32, #tpu.memory_space<vmem>>, %arg12: memref<1x8x128xf32, #tpu.memory_space<vmem>>) attributes {dimension_semantics = [#tpu.dimension_semantics<parallel>], iteration_bounds = array<i64: 2>, scalar_prefetch = 0 : i64, scratch_operands = 1 : i64, tpu.core_type = #tpu.core_type<tc>, window_params = [{transform_indices = @transform_0, window_bounds = array<i64: 1, 8, 128>}, {transform_indices = @transform_1, window_bounds = array<i64: 1, 8, 128>}, {transform_indices = @transform_2, window_bounds = array<i64: 1, 8, 128>}, {pipeline_mode = #tpu.pipeline_mode<synchronous>, transform_indices = @transform_3, window_bounds = array<i64: 1, 128>}, {pipeline_mode = #tpu.pipeline_mode<synchronous>, transform_indices = @transform_4, window_bounds = array<i64: 1, 128>}, {pipeline_mode = #tpu.pipeline_mode<synchronous>, transform_indices = @transform_5, window_bounds = array<i64: 128, 128>}, {pipeline_mode = #tpu.pipeline_mode<synchronous>, transform_indices = @transform_6, window_bounds = array<i64: 128, 128>}, {pipeline_mode = #tpu.pipeline_mode<synchronous>, transform_indices = @transform_7, window_bounds = array<i64: 128, 128>}, {pipeline_mode = #tpu.pipeline_mode<synchronous>, transform_indices = @transform_8, window_bounds = array<i64: 128, 128>}, {pipeline_mode = #tpu.pipeline_mode<synchronous>, transform_indices = @transform_9, window_bounds = array<i64: 1, 128>}, {transform_indices = @transform_10, window_bounds = array<i64: 1, 8, 128>}]} {
    %c0 = arith.constant 0 : index
    %c0_0 = arith.constant 0 : index
    %0 = vector.load %arg4[%c0, %c0_0] : memref<1x128xf32, #tpu.memory_space<vmem>>, vector<1x128xf32>
    %c0_1 = arith.constant 0 : index
    %c0_2 = arith.constant 0 : index
    %1 = vector.load %arg5[%c0_1, %c0_2] : memref<1x128xf32, #tpu.memory_space<vmem>>, vector<1x128xf32>
    %c0_3 = arith.constant 0 : index
    %c0_4 = arith.constant 0 : index
    %c0_5 = arith.constant 0 : index
    %2 = vector.load %arg1[%c0_3, %c0_4, %c0_5] : memref<1x8x128xf32, #tpu.memory_space<vmem>>, vector<1x8x128xf32>
    %c0_6 = arith.constant 0 : index
    %c0_7 = arith.constant 0 : index
    %c0_8 = arith.constant 0 : index
    %3 = vector.load %arg2[%c0_6, %c0_7, %c0_8] : memref<1x8x128xf32, #tpu.memory_space<vmem>>, vector<1x8x128xf32>
    %c0_9 = arith.constant 0 : index
    %c0_10 = arith.constant 0 : index
    %c0_11 = arith.constant 0 : index
    %4 = vector.load %arg3[%c0_9, %c0_10, %c0_11] : memref<1x8x128xf32, #tpu.memory_space<vmem>>, vector<1x8x128xf32>
    %cst = arith.constant dense<0.000000e+00> : vector<1x8xf32>
    %5 = vector.multi_reduction <add>, %2, %cst [2] : vector<1x8x128xf32> to vector<1x8xf32>
    %6 = vector.shape_cast %5 : vector<1x8xf32> to vector<1x8x1xf32>
    %cst_12 = arith.constant 1.280000e+02 : f32
    %7 = vector.broadcast %cst_12 : f32 to vector<1x8x1xf32>
    %8 = arith.divf %6, %7 : vector<1x8x1xf32>
    %9 = vector.broadcast %8 : vector<1x8x1xf32> to vector<1x8x128xf32>
    %10 = arith.subf %2, %9 : vector<1x8x128xf32>
    %11 = arith.mulf %10, %10 : vector<1x8x128xf32>
    %cst_13 = arith.constant dense<0.000000e+00> : vector<1x8xf32>
    %12 = vector.multi_reduction <add>, %11, %cst_13 [2] : vector<1x8x128xf32> to vector<1x8xf32>
    %13 = vector.shape_cast %12 : vector<1x8xf32> to vector<1x8x1xf32>
    %cst_14 = arith.constant 1.280000e+02 : f32
    %14 = vector.broadcast %cst_14 : f32 to vector<1x8x1xf32>
    %15 = arith.divf %13, %14 : vector<1x8x1xf32>
    %cst_15 = arith.constant 9.99999974E-6 : f32
    %16 = vector.broadcast %cst_15 : f32 to vector<1x8x1xf32>
    %17 = arith.addf %15, %16 : vector<1x8x1xf32>
    %18 = math.rsqrt %17 : vector<1x8x1xf32>
    %19 = vector.broadcast %18 : vector<1x8x1xf32> to vector<1x8x128xf32>
    %20 = arith.mulf %10, %19 : vector<1x8x128xf32>
    %21 = vector.shape_cast %0 : vector<1x128xf32> to vector<1x1x128xf32>
    %22 = vector.broadcast %21 : vector<1x1x128xf32> to vector<1x8x128xf32>
    %23 = arith.mulf %20, %22 : vector<1x8x128xf32>
    %24 = vector.shape_cast %1 : vector<1x128xf32> to vector<1x1x128xf32>
    %25 = vector.broadcast %24 : vector<1x1x128xf32> to vector<1x8x128xf32>
    %26 = arith.addf %23, %25 : vector<1x8x128xf32>
    %27 = arith.truncf %26 : vector<1x8x128xf32> to vector<1x8x128xbf16>
    %c0_16 = arith.constant 0 : index
    %c0_17 = arith.constant 0 : index
    %28 = vector.load %arg6[%c0_16, %c0_17] : memref<128x128xbf16, #tpu.memory_space<vmem>>, vector<128x128xbf16>
    "tpu.trace_start"() <{level = 10 : i32, message = "bld,de->ble"}> : () -> ()
    %cst_18 = arith.constant dense<0.000000e+00> : vector<1x8x128xf32>
    %29 = tpu.matmul %27, %28, %cst_18 {dimension_numbers = #tpu.dot_dimension_numbers<[2], [0], [0, 1], [1], [0, 0, 0, 1, 1, 1], [], []>} : vector<1x8x128xbf16>, vector<128x128xbf16>, vector<1x8x128xf32> -> vector<1x8x128xf32>
    "tpu.trace_stop"() : () -> ()
    %cst_19 = arith.constant dense<0.000000e+00> : vector<1x8xf32>
    %30 = vector.multi_reduction <add>, %3, %cst_19 [2] : vector<1x8x128xf32> to vector<1x8xf32>
    %31 = vector.shape_cast %30 : vector<1x8xf32> to vector<1x8x1xf32>
    %cst_20 = arith.constant 1.280000e+02 : f32
    %32 = vector.broadcast %cst_20 : f32 to vector<1x8x1xf32>
    %33 = arith.divf %31, %32 : vector<1x8x1xf32>
    %34 = vector.broadcast %33 : vector<1x8x1xf32> to vector<1x8x128xf32>
    %35 = arith.subf %3, %34 : vector<1x8x128xf32>
    %36 = arith.mulf %35, %35 : vector<1x8x128xf32>
    %cst_21 = arith.constant dense<0.000000e+00> : vector<1x8xf32>
    %37 = vector.multi_reduction <add>, %36, %cst_21 [2] : vector<1x8x128xf32> to vector<1x8xf32>
    %38 = vector.shape_cast %37 : vector<1x8xf32> to vector<1x8x1xf32>
    %cst_22 = arith.constant 1.280000e+02 : f32
    %39 = vector.broadcast %cst_22 : f32 to vector<1x8x1xf32>
    %40 = arith.divf %38, %39 : vector<1x8x1xf32>
    %cst_23 = arith.constant 9.99999974E-6 : f32
    %41 = vector.broadcast %cst_23 : f32 to vector<1x8x1xf32>
    %42 = arith.addf %40, %41 : vector<1x8x1xf32>
    %43 = math.rsqrt %42 : vector<1x8x1xf32>
    %44 = vector.broadcast %43 : vector<1x8x1xf32> to vector<1x8x128xf32>
    %45 = arith.mulf %35, %44 : vector<1x8x128xf32>
    %46 = vector.shape_cast %0 : vector<1x128xf32> to vector<1x1x128xf32>
    %47 = vector.broadcast %46 : vector<1x1x128xf32> to vector<1x8x128xf32>
    %48 = arith.mulf %45, %47 : vector<1x8x128xf32>
    %49 = vector.shape_cast %1 : vector<1x128xf32> to vector<1x1x128xf32>
    %50 = vector.broadcast %49 : vector<1x1x128xf32> to vector<1x8x128xf32>
    %51 = arith.addf %48, %50 : vector<1x8x128xf32>
    %52 = arith.truncf %51 : vector<1x8x128xf32> to vector<1x8x128xbf16>
    %c0_24 = arith.constant 0 : index
    %c0_25 = arith.constant 0 : index
    %53 = vector.load %arg7[%c0_24, %c0_25] : memref<128x128xbf16, #tpu.memory_space<vmem>>, vector<128x128xbf16>
    "tpu.trace_start"() <{level = 10 : i32, message = "bld,de->ble"}> : () -> ()
    %cst_26 = arith.constant dense<0.000000e+00> : vector<1x8x128xf32>
    %54 = tpu.matmul %52, %53, %cst_26 {dimension_numbers = #tpu.dot_dimension_numbers<[2], [0], [0, 1], [1], [0, 0, 0, 1, 1, 1], [], []>} : vector<1x8x128xbf16>, vector<128x128xbf16>, vector<1x8x128xf32> -> vector<1x8x128xf32>
    "tpu.trace_stop"() : () -> ()
    %cst_27 = arith.constant dense<0.000000e+00> : vector<1x8xf32>
    %55 = vector.multi_reduction <add>, %4, %cst_27 [2] : vector<1x8x128xf32> to vector<1x8xf32>
    %56 = vector.shape_cast %55 : vector<1x8xf32> to vector<1x8x1xf32>
    %cst_28 = arith.constant 1.280000e+02 : f32
    %57 = vector.broadcast %cst_28 : f32 to vector<1x8x1xf32>
    %58 = arith.divf %56, %57 : vector<1x8x1xf32>
    %59 = vector.broadcast %58 : vector<1x8x1xf32> to vector<1x8x128xf32>
    %60 = arith.subf %4, %59 : vector<1x8x128xf32>
    %61 = arith.mulf %60, %60 : vector<1x8x128xf32>
    %cst_29 = arith.constant dense<0.000000e+00> : vector<1x8xf32>
    %62 = vector.multi_reduction <add>, %61, %cst_29 [2] : vector<1x8x128xf32> to vector<1x8xf32>
    %63 = vector.shape_cast %62 : vector<1x8xf32> to vector<1x8x1xf32>
    %cst_30 = arith.constant 1.280000e+02 : f32
    %64 = vector.broadcast %cst_30 : f32 to vector<1x8x1xf32>
    %65 = arith.divf %63, %64 : vector<1x8x1xf32>
    %cst_31 = arith.constant 9.99999974E-6 : f32
    %66 = vector.broadcast %cst_31 : f32 to vector<1x8x1xf32>
    %67 = arith.addf %65, %66 : vector<1x8x1xf32>
    %68 = math.rsqrt %67 : vector<1x8x1xf32>
    %69 = vector.broadcast %68 : vector<1x8x1xf32> to vector<1x8x128xf32>
    %70 = arith.mulf %60, %69 : vector<1x8x128xf32>
    %71 = vector.shape_cast %0 : vector<1x128xf32> to vector<1x1x128xf32>
    %72 = vector.broadcast %71 : vector<1x1x128xf32> to vector<1x8x128xf32>
    %73 = arith.mulf %70, %72 : vector<1x8x128xf32>
    %74 = vector.shape_cast %1 : vector<1x128xf32> to vector<1x1x128xf32>
    %75 = vector.broadcast %74 : vector<1x1x128xf32> to vector<1x8x128xf32>
    %76 = arith.addf %73, %75 : vector<1x8x128xf32>
    %77 = arith.truncf %76 : vector<1x8x128xf32> to vector<1x8x128xbf16>
    %c0_32 = arith.constant 0 : index
    %c0_33 = arith.constant 0 : index
    %78 = vector.load %arg8[%c0_32, %c0_33] : memref<128x128xbf16, #tpu.memory_space<vmem>>, vector<128x128xbf16>
    "tpu.trace_start"() <{level = 10 : i32, message = "bld,de->ble"}> : () -> ()
    %cst_34 = arith.constant dense<0.000000e+00> : vector<1x8x128xf32>
    %79 = tpu.matmul %77, %78, %cst_34 {dimension_numbers = #tpu.dot_dimension_numbers<[2], [0], [0, 1], [1], [0, 0, 0, 1, 1, 1], [], []>} : vector<1x8x128xbf16>, vector<128x128xbf16>, vector<1x8x128xf32> -> vector<1x8x128xf32>
    "tpu.trace_stop"() : () -> ()
    %80 = arith.truncf %29 : vector<1x8x128xf32> to vector<1x8x128xbf16>
    %81 = arith.truncf %54 : vector<1x8x128xf32> to vector<1x8x128xbf16>
    %82 = arith.truncf %79 : vector<1x8x128xf32> to vector<1x8x128xbf16>
    "tpu.trace_start"() <{level = 10 : i32, message = "bqe,bke->bqk"}> : () -> ()
    %cst_35 = arith.constant dense<0.000000e+00> : vector<1x8x8xf32>
    %83 = tpu.matmul %80, %81, %cst_35 {dimension_numbers = #tpu.dot_dimension_numbers<[2], [2], [1], [1], [0, 0, 0, 1, 1, 1], [0], [0]>} : vector<1x8x128xbf16>, vector<1x8x128xbf16>, vector<1x8x8xf32> -> vector<1x8x8xf32>
    "tpu.trace_stop"() : () -> ()
    %cst_36 = arith.constant dense<0xFF800000> : vector<1x8xf32>
    %84 = vector.multi_reduction <maximumf>, %83, %cst_36 [2] : vector<1x8x8xf32> to vector<1x8xf32>
    %85 = vector.shape_cast %84 : vector<1x8xf32> to vector<1x8x1xf32>
    %86 = vector.broadcast %85 : vector<1x8x1xf32> to vector<1x8x8xf32>
    %87 = arith.subf %83, %86 : vector<1x8x8xf32>
    %88 = math.exp %87 : vector<1x8x8xf32>
    %cst_37 = arith.constant dense<0.000000e+00> : vector<1x8xf32>
    %89 = vector.multi_reduction <add>, %88, %cst_37 [2] : vector<1x8x8xf32> to vector<1x8xf32>
    %90 = vector.shape_cast %89 : vector<1x8xf32> to vector<1x8x1xf32>
    %91 = tpu.reciprocal %90 {approx = true} : vector<1x8x1xf32> -> vector<1x8x1xf32>
    %92 = vector.broadcast %91 : vector<1x8x1xf32> to vector<1x8x8xf32>
    %93 = arith.mulf %88, %92 : vector<1x8x8xf32>
    %94 = arith.truncf %93 : vector<1x8x8xf32> to vector<1x8x8xbf16>
    "tpu.trace_start"() <{level = 10 : i32, message = "bqk,bke->bqe"}> : () -> ()
    %cst_38 = arith.constant dense<0.000000e+00> : vector<1x8x128xf32>
    %95 = tpu.matmul %94, %82, %cst_38 {dimension_numbers = #tpu.dot_dimension_numbers<[2], [1], [1], [2], [0, 0, 0, 1, 1, 2], [0], [0]>} : vector<1x8x8xbf16>, vector<1x8x128xbf16>, vector<1x8x128xf32> -> vector<1x8x128xf32>
    "tpu.trace_stop"() : () -> ()
    %c0_39 = arith.constant 0 : index
    %c0_40 = arith.constant 0 : index
    %c0_41 = arith.constant 0 : index
    %96 = vector.load %arg12[%c0_39, %c0_40, %c0_41] : memref<1x8x128xf32, #tpu.memory_space<vmem>>, vector<1x8x128xf32>
    tpu.vector_store %arg12[%c0_39, %c0_40, %c0_41], %95 {strides = array<i32>} : memref<1x8x128xf32, #tpu.memory_space<vmem>>, vector<1x8x128xf32>,
    %c0_42 = arith.constant 0 : index
    %c0_43 = arith.constant 0 : index
    %c0_44 = arith.constant 0 : index
    %97 = vector.load %arg12[%c0_42, %c0_43, %c0_44] : memref<1x8x128xf32, #tpu.memory_space<vmem>>, vector<1x8x128xf32>
    %98 = arith.truncf %97 : vector<1x8x128xf32> to vector<1x8x128xbf16>
    %c0_45 = arith.constant 0 : index
    %c0_46 = arith.constant 0 : index
    %99 = vector.load %arg9[%c0_45, %c0_46] : memref<128x128xbf16, #tpu.memory_space<vmem>>, vector<128x128xbf16>
    "tpu.trace_start"() <{level = 10 : i32, message = "bld,de->ble"}> : () -> ()
    %cst_47 = arith.constant dense<0.000000e+00> : vector<1x8x128xf32>
    %100 = tpu.matmul %98, %99, %cst_47 {dimension_numbers = #tpu.dot_dimension_numbers<[2], [0], [0, 1], [1], [0, 0, 0, 1, 1, 1], [], []>} : vector<1x8x128xbf16>, vector<128x128xbf16>, vector<1x8x128xf32> -> vector<1x8x128xf32>
    "tpu.trace_stop"() : () -> ()
    %c0_48 = arith.constant 0 : index
    %c0_49 = arith.constant 0 : index
    %101 = vector.load %arg10[%c0_48, %c0_49] : memref<1x128xf32, #tpu.memory_space<vmem>>, vector<1x128xf32>
    %102 = vector.shape_cast %101 : vector<1x128xf32> to vector<1x1x128xf32>
    %103 = vector.broadcast %102 : vector<1x1x128xf32> to vector<1x8x128xf32>
    %104 = arith.addf %100, %103 : vector<1x8x128xf32>
    %105 = arith.addf %104, %2 : vector<1x8x128xf32>
    %c0_50 = arith.constant 0 : index
    %c0_51 = arith.constant 0 : index
    %c0_52 = arith.constant 0 : index
    %106 = vector.load %arg11[%c0_50, %c0_51, %c0_52] : memref<1x8x128xf32, #tpu.memory_space<vmem>>, vector<1x8x128xf32>
    tpu.vector_store %arg11[%c0_50, %c0_51, %c0_52], %105 {strides = array<i32>} : memref<1x8x128xf32, #tpu.memory_space<vmem>>, vector<1x8x128xf32>,
    return
  }
  func.func @transform_0(%arg0: i32) -> (i32, i32, i32) {
    %c0_i32 = arith.constant 0 : i32
    %c0_i32_0 = arith.constant 0 : i32
    %c0_i32_1 = arith.constant 0 : i32
    return %arg0, %c0_i32, %c0_i32_0 : i32, i32, i32
  }
  func.func @transform_1(%arg0: i32) -> (i32, i32, i32) {
    %c0_i32 = arith.constant 0 : i32
    %c0_i32_0 = arith.constant 0 : i32
    %c0_i32_1 = arith.constant 0 : i32
    return %arg0, %c0_i32, %c0_i32_0 : i32, i32, i32
  }
  func.func @transform_2(%arg0: i32) -> (i32, i32, i32) {
    %c0_i32 = arith.constant 0 : i32
    %c0_i32_0 = arith.constant 0 : i32
    %c0_i32_1 = arith.constant 0 : i32
    return %arg0, %c0_i32, %c0_i32_0 : i32, i32, i32
  }
  func.func @transform_3(%arg0: i32) -> (i32, i32) {
    %c0_i32 = arith.constant 0 : i32
    %c0_i32_0 = arith.constant 0 : i32
    %c0_i32_1 = arith.constant 0 : i32
    return %c0_i32, %c0_i32_0 : i32, i32
  }
  func.func @transform_4(%arg0: i32) -> (i32, i32) {
    %c0_i32 = arith.constant 0 : i32
    %c0_i32_0 = arith.constant 0 : i32
    %c0_i32_1 = arith.constant 0 : i32
    return %c0_i32, %c0_i32_0 : i32, i32
  }
  func.func @transform_5(%arg0: i32) -> (i32, i32) {
    %c0_i32 = arith.constant 0 : i32
    %c0_i32_0 = arith.constant 0 : i32
    %c0_i32_1 = arith.constant 0 : i32
    return %c0_i32, %c0_i32_0 : i32, i32
  }
  func.func @transform_6(%arg0: i32) -> (i32, i32) {
    %c0_i32 = arith.constant 0 : i32
    %c0_i32_0 = arith.constant 0 : i32
    %c0_i32_1 = arith.constant 0 : i32
    return %c0_i32, %c0_i32_0 : i32, i32
  }
  func.func @transform_7(%arg0: i32) -> (i32, i32) {
    %c0_i32 = arith.constant 0 : i32
    %c0_i32_0 = arith.constant 0 : i32
    %c0_i32_1 = arith.constant 0 : i32
    return %c0_i32, %c0_i32_0 : i32, i32
  }
  func.func @transform_8(%arg0: i32) -> (i32, i32) {
    %c0_i32 = arith.constant 0 : i32
    %c0_i32_0 = arith.constant 0 : i32
    %c0_i32_1 = arith.constant 0 : i32
    return %c0_i32, %c0_i32_0 : i32, i32
  }
  func.func @transform_9(%arg0: i32) -> (i32, i32) {
    %c0_i32 = arith.constant 0 : i32
    %c0_i32_0 = arith.constant 0 : i32
    %c0_i32_1 = arith.constant 0 : i32
    return %c0_i32, %c0_i32_0 : i32, i32
  }
  func.func @transform_10(%arg0: i32) -> (i32, i32, i32) {
    %c0_i32 = arith.constant 0 : i32
    %c0_i32_0 = arith.constant 0 : i32
    %c0_i32_1 = arith.constant 0 : i32
    return %arg0, %c0_i32, %c0_i32_0 : i32, i32, i32
  }
}

module attributes {stable_mosaic.version = 11 : i64} {
  func.func @mha_cross_kernel(%arg0: i32, %arg1: memref<1x8x128xf32, #tpu.memory_space<vmem>>, %arg2: memref<1x8x128xf32, #tpu.memory_space<vmem>>, %arg3: memref<1x8x128xf32, #tpu.memory_space<vmem>>, %arg4: memref<1x128xf32, #tpu.memory_space<vmem>>, %arg5: memref<1x128xf32, #tpu.memory_space<vmem>>, %arg6: memref<128x128xbf16, #tpu.memory_space<vmem>>, %arg7: memref<128x128xbf16, #tpu.memory_space<vmem>>, %arg8: memref<128x128xbf16, #tpu.memory_space<vmem>>, %arg9: memref<128x128xbf16, #tpu.memory_space<vmem>>, %arg10: memref<1x128xf32, #tpu.memory_space<vmem>>, %arg11: memref<1x8x128xf32, #tpu.memory_space<vmem>>, %arg12: memref<1x8x128xf32, #tpu.memory_space<vmem>>) attributes {dimension_semantics = [#tpu.dimension_semantics<parallel>], iteration_bounds = array<i64: 2>, scalar_prefetch = 0 : i64, scratch_operands = 1 : i64, tpu.core_type = #tpu.core_type<tc>, window_params = [{transform_indices = @transform_0, window_bounds = array<i64: 1, 8, 128>}, {transform_indices = @transform_1, window_bounds = array<i64: 1, 8, 128>}, {transform_indices = @transform_2, window_bounds = array<i64: 1, 8, 128>}, {pipeline_mode = #tpu.pipeline_mode<synchronous>, transform_indices = @transform_3, window_bounds = array<i64: 1, 128>}, {pipeline_mode = #tpu.pipeline_mode<synchronous>, transform_indices = @transform_4, window_bounds = array<i64: 1, 128>}, {pipeline_mode = #tpu.pipeline_mode<synchronous>, transform_indices = @transform_5, window_bounds = array<i64: 128, 128>}, {pipeline_mode = #tpu.pipeline_mode<synchronous>, transform_indices = @transform_6, window_bounds = array<i64: 128, 128>}, {pipeline_mode = #tpu.pipeline_mode<synchronous>, transform_indices = @transform_7, window_bounds = array<i64: 128, 128>}, {pipeline_mode = #tpu.pipeline_mode<synchronous>, transform_indices = @transform_8, window_bounds = array<i64: 128, 128>}, {pipeline_mode = #tpu.pipeline_mode<synchronous>, transform_indices = @transform_9, window_bounds = array<i64: 1, 128>}, {transform_indices = @transform_10, window_bounds = array<i64: 1, 8, 128>}]} {
    %c0 = arith.constant 0 : index
    %c0_0 = arith.constant 0 : index
    %0 = vector.load %arg4[%c0, %c0_0] : memref<1x128xf32, #tpu.memory_space<vmem>>, vector<1x128xf32>
    %c0_1 = arith.constant 0 : index
    %c0_2 = arith.constant 0 : index
    %1 = vector.load %arg5[%c0_1, %c0_2] : memref<1x128xf32, #tpu.memory_space<vmem>>, vector<1x128xf32>
    %c0_3 = arith.constant 0 : index
    %c0_4 = arith.constant 0 : index
    %c0_5 = arith.constant 0 : index
    %2 = vector.load %arg1[%c0_3, %c0_4, %c0_5] : memref<1x8x128xf32, #tpu.memory_space<vmem>>, vector<1x8x128xf32>
    %c0_6 = arith.constant 0 : index
    %c0_7 = arith.constant 0 : index
    %c0_8 = arith.constant 0 : index
    %3 = vector.load %arg2[%c0_6, %c0_7, %c0_8] : memref<1x8x128xf32, #tpu.memory_space<vmem>>, vector<1x8x128xf32>
    %c0_9 = arith.constant 0 : index
    %c0_10 = arith.constant 0 : index
    %c0_11 = arith.constant 0 : index
    %4 = vector.load %arg3[%c0_9, %c0_10, %c0_11] : memref<1x8x128xf32, #tpu.memory_space<vmem>>, vector<1x8x128xf32>
    %cst = arith.constant dense<0.000000e+00> : vector<1x8xf32>
    %5 = vector.multi_reduction <add>, %2, %cst [2] : vector<1x8x128xf32> to vector<1x8xf32>
    %6 = vector.shape_cast %5 : vector<1x8xf32> to vector<1x8x1xf32>
    %cst_12 = arith.constant 1.280000e+02 : f32
    %7 = vector.broadcast %cst_12 : f32 to vector<1x8x1xf32>
    %8 = arith.divf %6, %7 : vector<1x8x1xf32>
    %9 = vector.broadcast %8 : vector<1x8x1xf32> to vector<1x8x128xf32>
    %10 = arith.subf %2, %9 : vector<1x8x128xf32>
    %11 = arith.mulf %10, %10 : vector<1x8x128xf32>
    %cst_13 = arith.constant dense<0.000000e+00> : vector<1x8xf32>
    %12 = vector.multi_reduction <add>, %11, %cst_13 [2] : vector<1x8x128xf32> to vector<1x8xf32>
    %13 = vector.shape_cast %12 : vector<1x8xf32> to vector<1x8x1xf32>
    %cst_14 = arith.constant 1.280000e+02 : f32
    %14 = vector.broadcast %cst_14 : f32 to vector<1x8x1xf32>
    %15 = arith.divf %13, %14 : vector<1x8x1xf32>
    %cst_15 = arith.constant 9.99999974E-6 : f32
    %16 = vector.broadcast %cst_15 : f32 to vector<1x8x1xf32>
    %17 = arith.addf %15, %16 : vector<1x8x1xf32>
    %18 = math.rsqrt %17 : vector<1x8x1xf32>
    %19 = vector.broadcast %18 : vector<1x8x1xf32> to vector<1x8x128xf32>
    %20 = arith.mulf %10, %19 : vector<1x8x128xf32>
    %21 = vector.shape_cast %0 : vector<1x128xf32> to vector<1x1x128xf32>
    %22 = vector.broadcast %21 : vector<1x1x128xf32> to vector<1x8x128xf32>
    %23 = arith.mulf %20, %22 : vector<1x8x128xf32>
    %24 = vector.shape_cast %1 : vector<1x128xf32> to vector<1x1x128xf32>
    %25 = vector.broadcast %24 : vector<1x1x128xf32> to vector<1x8x128xf32>
    %26 = arith.addf %23, %25 : vector<1x8x128xf32>
    %27 = arith.truncf %26 : vector<1x8x128xf32> to vector<1x8x128xbf16>
    %c0_16 = arith.constant 0 : index
    %c0_17 = arith.constant 0 : index
    %28 = vector.load %arg6[%c0_16, %c0_17] : memref<128x128xbf16, #tpu.memory_space<vmem>>, vector<128x128xbf16>
    "tpu.trace_start"() <{level = 10 : i32, message = "bld,de->ble"}> : () -> ()
    %cst_18 = arith.constant dense<0.000000e+00> : vector<1x8x128xf32>
    %29 = tpu.matmul %27, %28, %cst_18 {dimension_numbers = #tpu.dot_dimension_numbers<[2], [0], [0, 1], [1], [0, 0, 0, 1, 1, 1], [], []>} : vector<1x8x128xbf16>, vector<128x128xbf16>, vector<1x8x128xf32> -> vector<1x8x128xf32>
    "tpu.trace_stop"() : () -> ()
    %cst_19 = arith.constant dense<0.000000e+00> : vector<1x8xf32>
    %30 = vector.multi_reduction <add>, %3, %cst_19 [2] : vector<1x8x128xf32> to vector<1x8xf32>
    %31 = vector.shape_cast %30 : vector<1x8xf32> to vector<1x8x1xf32>
    %cst_20 = arith.constant 1.280000e+02 : f32
    %32 = vector.broadcast %cst_20 : f32 to vector<1x8x1xf32>
    %33 = arith.divf %31, %32 : vector<1x8x1xf32>
    %34 = vector.broadcast %33 : vector<1x8x1xf32> to vector<1x8x128xf32>
    %35 = arith.subf %3, %34 : vector<1x8x128xf32>
    %36 = arith.mulf %35, %35 : vector<1x8x128xf32>
    %cst_21 = arith.constant dense<0.000000e+00> : vector<1x8xf32>
    %37 = vector.multi_reduction <add>, %36, %cst_21 [2] : vector<1x8x128xf32> to vector<1x8xf32>
    %38 = vector.shape_cast %37 : vector<1x8xf32> to vector<1x8x1xf32>
    %cst_22 = arith.constant 1.280000e+02 : f32
    %39 = vector.broadcast %cst_22 : f32 to vector<1x8x1xf32>
    %40 = arith.divf %38, %39 : vector<1x8x1xf32>
    %cst_23 = arith.constant 9.99999974E-6 : f32
    %41 = vector.broadcast %cst_23 : f32 to vector<1x8x1xf32>
    %42 = arith.addf %40, %41 : vector<1x8x1xf32>
    %43 = math.rsqrt %42 : vector<1x8x1xf32>
    %44 = vector.broadcast %43 : vector<1x8x1xf32> to vector<1x8x128xf32>
    %45 = arith.mulf %35, %44 : vector<1x8x128xf32>
    %46 = vector.shape_cast %0 : vector<1x128xf32> to vector<1x1x128xf32>
    %47 = vector.broadcast %46 : vector<1x1x128xf32> to vector<1x8x128xf32>
    %48 = arith.mulf %45, %47 : vector<1x8x128xf32>
    %49 = vector.shape_cast %1 : vector<1x128xf32> to vector<1x1x128xf32>
    %50 = vector.broadcast %49 : vector<1x1x128xf32> to vector<1x8x128xf32>
    %51 = arith.addf %48, %50 : vector<1x8x128xf32>
    %52 = arith.truncf %51 : vector<1x8x128xf32> to vector<1x8x128xbf16>
    %c0_24 = arith.constant 0 : index
    %c0_25 = arith.constant 0 : index
    %53 = vector.load %arg7[%c0_24, %c0_25] : memref<128x128xbf16, #tpu.memory_space<vmem>>, vector<128x128xbf16>
    "tpu.trace_start"() <{level = 10 : i32, message = "bld,de->ble"}> : () -> ()
    %cst_26 = arith.constant dense<0.000000e+00> : vector<1x8x128xf32>
    %54 = tpu.matmul %52, %53, %cst_26 {dimension_numbers = #tpu.dot_dimension_numbers<[2], [0], [0, 1], [1], [0, 0, 0, 1, 1, 1], [], []>} : vector<1x8x128xbf16>, vector<128x128xbf16>, vector<1x8x128xf32> -> vector<1x8x128xf32>
    "tpu.trace_stop"() : () -> ()
    %cst_27 = arith.constant dense<0.000000e+00> : vector<1x8xf32>
    %55 = vector.multi_reduction <add>, %4, %cst_27 [2] : vector<1x8x128xf32> to vector<1x8xf32>
    %56 = vector.shape_cast %55 : vector<1x8xf32> to vector<1x8x1xf32>
    %cst_28 = arith.constant 1.280000e+02 : f32
    %57 = vector.broadcast %cst_28 : f32 to vector<1x8x1xf32>
    %58 = arith.divf %56, %57 : vector<1x8x1xf32>
    %59 = vector.broadcast %58 : vector<1x8x1xf32> to vector<1x8x128xf32>
    %60 = arith.subf %4, %59 : vector<1x8x128xf32>
    %61 = arith.mulf %60, %60 : vector<1x8x128xf32>
    %cst_29 = arith.constant dense<0.000000e+00> : vector<1x8xf32>
    %62 = vector.multi_reduction <add>, %61, %cst_29 [2] : vector<1x8x128xf32> to vector<1x8xf32>
    %63 = vector.shape_cast %62 : vector<1x8xf32> to vector<1x8x1xf32>
    %cst_30 = arith.constant 1.280000e+02 : f32
    %64 = vector.broadcast %cst_30 : f32 to vector<1x8x1xf32>
    %65 = arith.divf %63, %64 : vector<1x8x1xf32>
    %cst_31 = arith.constant 9.99999974E-6 : f32
    %66 = vector.broadcast %cst_31 : f32 to vector<1x8x1xf32>
    %67 = arith.addf %65, %66 : vector<1x8x1xf32>
    %68 = math.rsqrt %67 : vector<1x8x1xf32>
    %69 = vector.broadcast %68 : vector<1x8x1xf32> to vector<1x8x128xf32>
    %70 = arith.mulf %60, %69 : vector<1x8x128xf32>
    %71 = vector.shape_cast %0 : vector<1x128xf32> to vector<1x1x128xf32>
    %72 = vector.broadcast %71 : vector<1x1x128xf32> to vector<1x8x128xf32>
    %73 = arith.mulf %70, %72 : vector<1x8x128xf32>
    %74 = vector.shape_cast %1 : vector<1x128xf32> to vector<1x1x128xf32>
    %75 = vector.broadcast %74 : vector<1x1x128xf32> to vector<1x8x128xf32>
    %76 = arith.addf %73, %75 : vector<1x8x128xf32>
    %77 = arith.truncf %76 : vector<1x8x128xf32> to vector<1x8x128xbf16>
    %c0_32 = arith.constant 0 : index
    %c0_33 = arith.constant 0 : index
    %78 = vector.load %arg8[%c0_32, %c0_33] : memref<128x128xbf16, #tpu.memory_space<vmem>>, vector<128x128xbf16>
    "tpu.trace_start"() <{level = 10 : i32, message = "bld,de->ble"}> : () -> ()
    %cst_34 = arith.constant dense<0.000000e+00> : vector<1x8x128xf32>
    %79 = tpu.matmul %77, %78, %cst_34 {dimension_numbers = #tpu.dot_dimension_numbers<[2], [0], [0, 1], [1], [0, 0, 0, 1, 1, 1], [], []>} : vector<1x8x128xbf16>, vector<128x128xbf16>, vector<1x8x128xf32> -> vector<1x8x128xf32>
    "tpu.trace_stop"() : () -> ()
    %80 = arith.truncf %29 : vector<1x8x128xf32> to vector<1x8x128xbf16>
    %81 = arith.truncf %54 : vector<1x8x128xf32> to vector<1x8x128xbf16>
    %82 = arith.truncf %79 : vector<1x8x128xf32> to vector<1x8x128xbf16>
    "tpu.trace_start"() <{level = 10 : i32, message = "bqe,bke->bqk"}> : () -> ()
    %cst_35 = arith.constant dense<0.000000e+00> : vector<1x8x8xf32>
    %83 = tpu.matmul %80, %81, %cst_35 {dimension_numbers = #tpu.dot_dimension_numbers<[2], [2], [1], [1], [0, 0, 0, 1, 1, 1], [0], [0]>} : vector<1x8x128xbf16>, vector<1x8x128xbf16>, vector<1x8x8xf32> -> vector<1x8x8xf32>
    "tpu.trace_stop"() : () -> ()
    %cst_36 = arith.constant dense<0xFF800000> : vector<1x8xf32>
    %84 = vector.multi_reduction <maximumf>, %83, %cst_36 [2] : vector<1x8x8xf32> to vector<1x8xf32>
    %85 = vector.shape_cast %84 : vector<1x8xf32> to vector<1x8x1xf32>
    %86 = vector.broadcast %85 : vector<1x8x1xf32> to vector<1x8x8xf32>
    %87 = arith.subf %83, %86 : vector<1x8x8xf32>
    %88 = math.exp %87 : vector<1x8x8xf32>
    %cst_37 = arith.constant dense<0.000000e+00> : vector<1x8xf32>
    %89 = vector.multi_reduction <add>, %88, %cst_37 [2] : vector<1x8x8xf32> to vector<1x8xf32>
    %90 = vector.shape_cast %89 : vector<1x8xf32> to vector<1x8x1xf32>
    %91 = tpu.reciprocal %90 {approx = true} : vector<1x8x1xf32> -> vector<1x8x1xf32>
    %92 = vector.broadcast %91 : vector<1x8x1xf32> to vector<1x8x8xf32>
    %93 = arith.mulf %88, %92 : vector<1x8x8xf32>
    %94 = arith.truncf %93 : vector<1x8x8xf32> to vector<1x8x8xbf16>
    "tpu.trace_start"() <{level = 10 : i32, message = "bqk,bke->bqe"}> : () -> ()
    %cst_38 = arith.constant dense<0.000000e+00> : vector<1x8x128xf32>
    %95 = tpu.matmul %94, %82, %cst_38 {dimension_numbers = #tpu.dot_dimension_numbers<[2], [1], [1], [2], [0, 0, 0, 1, 1, 2], [0], [0]>} : vector<1x8x8xbf16>, vector<1x8x128xbf16>, vector<1x8x128xf32> -> vector<1x8x128xf32>
    "tpu.trace_stop"() : () -> ()
    %c0_39 = arith.constant 0 : index
    %c0_40 = arith.constant 0 : index
    %c0_41 = arith.constant 0 : index
    %96 = vector.load %arg12[%c0_39, %c0_40, %c0_41] : memref<1x8x128xf32, #tpu.memory_space<vmem>>, vector<1x8x128xf32>
    tpu.vector_store %arg12[%c0_39, %c0_40, %c0_41], %95 {strides = array<i32>} : memref<1x8x128xf32, #tpu.memory_space<vmem>>, vector<1x8x128xf32>,
    %c0_42 = arith.constant 0 : index
    %c0_43 = arith.constant 0 : index
    %c0_44 = arith.constant 0 : index
    %97 = vector.load %arg12[%c0_42, %c0_43, %c0_44] : memref<1x8x128xf32, #tpu.memory_space<vmem>>, vector<1x8x128xf32>
    %98 = arith.truncf %97 : vector<1x8x128xf32> to vector<1x8x128xbf16>
    %c0_45 = arith.constant 0 : index
    %c0_46 = arith.constant 0 : index
    %99 = vector.load %arg9[%c0_45, %c0_46] : memref<128x128xbf16, #tpu.memory_space<vmem>>, vector<128x128xbf16>
    "tpu.trace_start"() <{level = 10 : i32, message = "bld,de->ble"}> : () -> ()
    %cst_47 = arith.constant dense<0.000000e+00> : vector<1x8x128xf32>
    %100 = tpu.matmul %98, %99, %cst_47 {dimension_numbers = #tpu.dot_dimension_numbers<[2], [0], [0, 1], [1], [0, 0, 0, 1, 1, 1], [], []>} : vector<1x8x128xbf16>, vector<128x128xbf16>, vector<1x8x128xf32> -> vector<1x8x128xf32>
    "tpu.trace_stop"() : () -> ()
    %c0_48 = arith.constant 0 : index
    %c0_49 = arith.constant 0 : index
    %101 = vector.load %arg10[%c0_48, %c0_49] : memref<1x128xf32, #tpu.memory_space<vmem>>, vector<1x128xf32>
    %102 = vector.shape_cast %101 : vector<1x128xf32> to vector<1x1x128xf32>
    %103 = vector.broadcast %102 : vector<1x1x128xf32> to vector<1x8x128xf32>
    %104 = arith.addf %100, %103 : vector<1x8x128xf32>
    %105 = arith.addf %104, %2 : vector<1x8x128xf32>
    %c0_50 = arith.constant 0 : index
    %c0_51 = arith.constant 0 : index
    %c0_52 = arith.constant 0 : index
    %106 = vector.load %arg11[%c0_50, %c0_51, %c0_52] : memref<1x8x128xf32, #tpu.memory_space<vmem>>, vector<1x8x128xf32>
    tpu.vector_store %arg11[%c0_50, %c0_51, %c0_52], %105 {strides = array<i32>} : memref<1x8x128xf32, #tpu.memory_space<vmem>>, vector<1x8x128xf32>,
    return
  }
  func.func @transform_0(%arg0: i32) -> (i32, i32, i32) {
    %c0_i32 = arith.constant 0 : i32
    %c0_i32_0 = arith.constant 0 : i32
    %c0_i32_1 = arith.constant 0 : i32
    return %arg0, %c0_i32, %c0_i32_0 : i32, i32, i32
  }
  func.func @transform_1(%arg0: i32) -> (i32, i32, i32) {
    %c0_i32 = arith.constant 0 : i32
    %c0_i32_0 = arith.constant 0 : i32
    %c0_i32_1 = arith.constant 0 : i32
    return %arg0, %c0_i32, %c0_i32_0 : i32, i32, i32
  }
  func.func @transform_2(%arg0: i32) -> (i32, i32, i32) {
    %c0_i32 = arith.constant 0 : i32
    %c0_i32_0 = arith.constant 0 : i32
    %c0_i32_1 = arith.constant 0 : i32
    return %arg0, %c0_i32, %c0_i32_0 : i32, i32, i32
  }
  func.func @transform_3(%arg0: i32) -> (i32, i32) {
    %c0_i32 = arith.constant 0 : i32
    %c0_i32_0 = arith.constant 0 : i32
    %c0_i32_1 = arith.constant 0 : i32
    return %c0_i32, %c0_i32_0 : i32, i32
  }
  func.func @transform_4(%arg0: i32) -> (i32, i32) {
    %c0_i32 = arith.constant 0 : i32
    %c0_i32_0 = arith.constant 0 : i32
    %c0_i32_1 = arith.constant 0 : i32
    return %c0_i32, %c0_i32_0 : i32, i32
  }
  func.func @transform_5(%arg0: i32) -> (i32, i32) {
    %c0_i32 = arith.constant 0 : i32
    %c0_i32_0 = arith.constant 0 : i32
    %c0_i32_1 = arith.constant 0 : i32
    return %c0_i32, %c0_i32_0 : i32, i32
  }
  func.func @transform_6(%arg0: i32) -> (i32, i32) {
    %c0_i32 = arith.constant 0 : i32
    %c0_i32_0 = arith.constant 0 : i32
    %c0_i32_1 = arith.constant 0 : i32
    return %c0_i32, %c0_i32_0 : i32, i32
  }
  func.func @transform_7(%arg0: i32) -> (i32, i32) {
    %c0_i32 = arith.constant 0 : i32
    %c0_i32_0 = arith.constant 0 : i32
    %c0_i32_1 = arith.constant 0 : i32
    return %c0_i32, %c0_i32_0 : i32, i32
  }
  func.func @transform_8(%arg0: i32) -> (i32, i32) {
    %c0_i32 = arith.constant 0 : i32
    %c0_i32_0 = arith.constant 0 : i32
    %c0_i32_1 = arith.constant 0 : i32
    return %c0_i32, %c0_i32_0 : i32, i32
  }
  func.func @transform_9(%arg0: i32) -> (i32, i32) {
    %c0_i32 = arith.constant 0 : i32
    %c0_i32_0 = arith.constant 0 : i32
    %c0_i32_1 = arith.constant 0 : i32
    return %c0_i32, %c0_i32_0 : i32, i32
  }
  func.func @transform_10(%arg0: i32) -> (i32, i32, i32) {
    %c0_i32 = arith.constant 0 : i32
    %c0_i32_0 = arith.constant 0 : i32
    %c0_i32_1 = arith.constant 0 : i32
    return %arg0, %c0_i32, %c0_i32_0 : i32, i32, i32
  }
}

</mosaic_0001>

<llo_original>
// kernel: tpu_custom_call.1
$region0: #{tpu_custom_call.1}
  #allocation0 [shape = 'u32[]', space=smem, size = 0x4, offset = 0x4, fixed_abs, tag = 'smem constant byte address 0x4 - core index']
  #allocation1 [shape = 'u32[144,128]{1,0:T(1,128)}', space=vmem, size = 0x12000, scoped, tag = 'internal scratch']
  #allocation2 [shape = 'f32[1,8,128]{2,1,0:T(8,128)}', space=vmem, size = 0x1000, scoped, tag = 'scratch operand']
  %s0 = inlined_call_operand.hbm [shape: f32[2,8,128], index: 0, kind: input, shape index: {}]
  %s1 = inlined_call_operand.hbm [shape: f32[2,8,128], index: 1, kind: input, shape index: {}]
  %s2 = inlined_call_operand.hbm [shape: f32[2,8,128], index: 2, kind: input, shape index: {}]
  %s3 = inlined_call_operand.vmem [shape: f32[1,128], index: 3, kind: input, shape index: {}]
  %s4 = inlined_call_operand.vmem [shape: f32[1,128], index: 4, kind: input, shape index: {}]
  %s5 = inlined_call_operand.hbm [shape: bf16[128,128], index: 5, kind: input, shape index: {}]
  %s6 = inlined_call_operand.hbm [shape: bf16[128,128], index: 6, kind: input, shape index: {}]
  %s7 = inlined_call_operand.hbm [shape: bf16[128,128], index: 7, kind: input, shape index: {}]
  %s8 = inlined_call_operand.hbm [shape: bf16[128,128], index: 8, kind: input, shape index: {}]
  %s9 = inlined_call_operand.vmem [shape: f32[1,128], index: 9, kind: input, shape index: {}]
  %s10 = inlined_call_operand.hbm [shape: f32[2,8,128], index: 10, kind: output, shape index: {}]
  %s11 = sld [smem:[#allocation0]]
  $region101: #{tpu_custom_call.1} parent=0
    _
  %s13 = ssub.s32 1, %s11
  %s14 = scalar_select 0, %s13, %s11
  $region1: #{tpu_custom_call.1} parent=0
    #allocation3 [shape = 'u8[8192]{0}', space=vmem, size = 0x2000, scoped, tag = 'input window, operand 0']
    #allocation4 [shape = 's32[2]{0}', space=sflag, size = 0x8, scoped, tag = 'scoped memory for tpu_custom_call.1']
    #allocation5 [shape = 's32[2]{0}', space=sflag, size = 0x8, scoped, tag = 'scoped memory for tpu_custom_call.1']
    #allocation6 [shape = 'u8[8192]{0}', space=vmem, size = 0x2000, scoped, tag = 'input window, operand 1']
    #allocation7 [shape = 's32[2]{0}', space=sflag, size = 0x8, scoped, tag = 'scoped memory for tpu_custom_call.1']
    #allocation8 [shape = 'u8[8192]{0}', space=vmem, size = 0x2000, scoped, tag = 'input window, operand 2']
    #allocation9 [shape = 'u8[32768]{0}', space=vmem, size = 0x8000, scoped, tag = 'input window, operand 5, single buffered']
    #allocation10 [shape = 's32[1]{0}', space=sflag, size = 0x4, scoped, tag = 'scoped memory for tpu_custom_call.1']
    #allocation11 [shape = 'u8[32768]{0}', space=vmem, size = 0x8000, scoped, tag = 'input window, operand 6, single buffered']
    #allocation12 [shape = 'u8[32768]{0}', space=vmem, size = 0x8000, scoped, tag = 'input window, operand 7, single buffered']
    #allocation13 [shape = 's32[1]{0}', space=sflag, size = 0x4, scoped, tag = 'scoped memory for tpu_custom_call.1']
    #allocation14 [shape = 'u8[32768]{0}', space=vmem, size = 0x8000, scoped, tag = 'input window, operand 8, single buffered']
    #allocation15 [shape = 'u8[8192]{0}', space=vmem, size = 0x2000, scoped, tag = 'output window, operand 0']
    %15 = vsyncpa [#allocation4], 0
    %s16 = scalar_lea.sflag [#allocation4], 1
    %17 = vsyncpa %s16, 0
    %18 = vsyncpa [#allocation7], 0
    %s19 = scalar_lea.sflag [#allocation7], 1
    %20 = vsyncpa %s19, 0
    %21 = vsyncpa [#allocation10], 0
    %22 = vsyncpa [#allocation13], 0
    %23 = vsyncpa [#allocation5], 0
    %s24 = scalar_lea.sflag [#allocation5], 1
    %25 = vsyncpa %s24, 0
    loop: start=0, step=1, limit=4
    $region2: #{tpu_custom_call.1} parent=1 // loop_pre_header
      _
    $region3: #{tpu_custom_call.1} parent=1 // loop_header
      %s27 = sphi 0, %s31
      %p28 = scmp.ge.s32.totalorder %s27, 4
      %s37 = sphi 0, %s39
      %s40 = sphi 0, %s37
      %s41 = sphi 0, %s40
      %s57 = sphi 0, %s41
      %s63 = sphi 0, %s65
      %s66 = sphi 0, %s63
      %s67 = sphi 0, %s66
      %s83 = sphi 0, %s67
      %s89 = sphi 0, %s91
      %s92 = sphi 0, %s89
      %s93 = sphi 0, %s92
      %s109 = sphi 0, %s93
      %s113 = sphi 0, %s113
      %s115 = sphi 0, %s113
      %s116 = sphi 0, %s115
      %s130 = sphi 0, %s116
      %s134 = sphi 0, %s134
      %s136 = sphi 0, %s134
      %s137 = sphi 0, %s136
      %s151 = sphi 0, %s137
      %s155 = sphi 0, %s155
      %s157 = sphi 0, %s155
      %s158 = sphi 0, %s157
      %s172 = sphi 0, %s158
      %s176 = sphi 0, %s176
      %s178 = sphi 0, %s176
      %s179 = sphi 0, %s178
      %s193 = sphi 0, %s179
      %s197 = sphi 0, %s197
      %s199 = sphi 0, %s197
      %s200 = sphi 0, %s199
      %s214 = sphi 0, %s200
      %s218 = sphi 0, %s218
      %s220 = sphi 0, %s218
      %s221 = sphi 0, %s220
      %s235 = sphi 0, %s221
      %s239 = sphi 0, %s239
      %s241 = sphi 0, %s239
      %s242 = sphi 0, %s241
      %s256 = sphi 0, %s242
      %s262 = sphi 0, %s264
      %s265 = sphi 0, %s262
      %s266 = sphi 0, %s265
      %s282 = sphi 0, %s266
    $region4: #{tpu_custom_call.1} parent=1 // loop_header_branch
      %30 = sbr.rel (%p28) target = $region8
    $region5: #{tpu_custom_call.1} parent=1 // loop_body
      %s32 = ssub.s32 %s27, 1
      %s33 = ssub.s32 %s27, 2
      %s34 = sadd.s32 %s27, 1
      %s35 = ssub.s32 %s27, %s34
      %p36 = scmp.eq.s32.totalorder %s35, 0
      %s38 = sadd.s32 %s37, 1
      %s39 = scalar_select %p36, %s37, %s38
      %p42 = pneg %p36
      %p43 = scmp.eq.s32.totalorder %s27, 1
      %p44 = por %p42, %p43
      %p45 = scmp.ne.s32.totalorder %s37, %s40
      %p46 = scmp.eq.s32.totalorder %s27, 0
      %p47 = por %p45, %p46
      %p48 = scmp.ne.s32.totalorder %s37, %s40
      %p49 = scmp.eq.s32.totalorder %s32, 1
      %p50 = por %p48, %p49
      %p51 = scmp.ne.s32.totalorder %s40, %s41
      %p52 = scmp.eq.s32.totalorder %s32, 0
      %p53 = por %p51, %p52
      %p54 = scmp.ne.s32.totalorder %s40, %s41
      %p55 = scmp.eq.s32.totalorder %s33, 1
      %p56 = por %p54, %p55
      %p58 = scmp.ne.s32.totalorder %s41, %s57
      %p59 = scmp.eq.s32.totalorder %s33, 0
      %p60 = por %p58, %p59
      %s61 = ssub.s32 %s27, %s34
      %p62 = scmp.eq.s32.totalorder %s61, 0
      %s64 = sadd.s32 %s63, 1
      %s65 = scalar_select %p62, %s63, %s64
      %p68 = pneg %p62
      %p69 = scmp.eq.s32.totalorder %s27, 1
      %p70 = por %p68, %p69
      %p71 = scmp.ne.s32.totalorder %s63, %s66
      %p72 = scmp.eq.s32.totalorder %s27, 0
      %p73 = por %p71, %p72
      %p74 = scmp.ne.s32.totalorder %s63, %s66
      %p75 = scmp.eq.s32.totalorder %s32, 1
      %p76 = por %p74, %p75
      %p77 = scmp.ne.s32.totalorder %s66, %s67
      %p78 = scmp.eq.s32.totalorder %s32, 0
      %p79 = por %p77, %p78
      %p80 = scmp.ne.s32.totalorder %s66, %s67
      %p81 = scmp.eq.s32.totalorder %s33, 1
      %p82 = por %p80, %p81
      %p84 = scmp.ne.s32.totalorder %s67, %s83
      %p85 = scmp.eq.s32.totalorder %s33, 0
      %p86 = por %p84, %p85
      %s87 = ssub.s32 %s27, %s34
      %p88 = scmp.eq.s32.totalorder %s87, 0
      %s90 = sadd.s32 %s89, 1
      %s91 = scalar_select %p88, %s89, %s90
      %p94 = pneg %p88
      %p95 = scmp.eq.s32.totalorder %s27, 1
      %p96 = por %p94, %p95
      %p97 = scmp.ne.s32.totalorder %s89, %s92
      %p98 = scmp.eq.s32.totalorder %s27, 0
      %p99 = por %p97, %p98
      %p100 = scmp.ne.s32.totalorder %s89, %s92
      %p101 = scmp.eq.s32.totalorder %s32, 1
      %p102 = por %p100, %p101
      %p103 = scmp.ne.s32.totalorder %s92, %s93
      %p104 = scmp.eq.s32.totalorder %s32, 0
      %p105 = por %p103, %p104
      %p106 = scmp.ne.s32.totalorder %s92, %s93
      %p107 = scmp.eq.s32.totalorder %s33, 1
      %p108 = por %p106, %p107
      %p110 = scmp.ne.s32.totalorder %s93, %s109
      %p111 = scmp.eq.s32.totalorder %s33, 0
      %p112 = por %p110, %p111
      %s114 = sadd.s32 %s113, 1
      %p117 = scmp.eq.s32.totalorder %s27, 1
      %p118 = scmp.ne.s32.totalorder %s113, %s115
      %p119 = scmp.eq.s32.totalorder %s27, 0
      %p120 = por %p118, %p119
      %p121 = scmp.ne.s32.totalorder %s113, %s115
      %p122 = scmp.eq.s32.totalorder %s32, 1
      %p123 = por %p121, %p122
      %p124 = scmp.ne.s32.totalorder %s115, %s116
      %p125 = scmp.eq.s32.totalorder %s32, 0
      %p126 = por %p124, %p125
      %p127 = scmp.ne.s32.totalorder %s115, %s116
      %p128 = scmp.eq.s32.totalorder %s33, 1
      %p129 = por %p127, %p128
      %p131 = scmp.ne.s32.totalorder %s116, %s130
      %p132 = scmp.eq.s32.totalorder %s33, 0
      %p133 = por %p131, %p132
      %s135 = sadd.s32 %s134, 1
      %p138 = scmp.eq.s32.totalorder %s27, 1
      %p139 = scmp.ne.s32.totalorder %s134, %s136
      %p140 = scmp.eq.s32.totalorder %s27, 0
      %p141 = por %p139, %p140
      %p142 = scmp.ne.s32.totalorder %s134, %s136
      %p143 = scmp.eq.s32.totalorder %s32, 1
      %p144 = por %p142, %p143
      %p145 = scmp.ne.s32.totalorder %s136, %s137
      %p146 = scmp.eq.s32.totalorder %s32, 0
      %p147 = por %p145, %p146
      %p148 = scmp.ne.s32.totalorder %s136, %s137
      %p149 = scmp.eq.s32.totalorder %s33, 1
      %p150 = por %p148, %p149
      %p152 = scmp.ne.s32.totalorder %s137, %s151
      %p153 = scmp.eq.s32.totalorder %s33, 0
      %p154 = por %p152, %p153
      %s156 = sadd.s32 %s155, 1
      %p159 = scmp.eq.s32.totalorder %s27, 1
      %p160 = scmp.ne.s32.totalorder %s155, %s157
      %p161 = scmp.eq.s32.totalorder %s27, 0
      %p162 = por %p160, %p161
      %p163 = scmp.ne.s32.totalorder %s155, %s157
      %p164 = scmp.eq.s32.totalorder %s32, 1
      %p165 = por %p163, %p164
      %p166 = scmp.ne.s32.totalorder %s157, %s158
      %p167 = scmp.eq.s32.totalorder %s32, 0
      %p168 = por %p166, %p167
      %p169 = scmp.ne.s32.totalorder %s157, %s158
      %p170 = scmp.eq.s32.totalorder %s33, 1
      %p171 = por %p169, %p170
      %p173 = scmp.ne.s32.totalorder %s158, %s172
      %p174 = scmp.eq.s32.totalorder %s33, 0
      %p175 = por %p173, %p174
      %s177 = sadd.s32 %s176, 1
      %p180 = scmp.eq.s32.totalorder %s27, 1
      %p181 = scmp.ne.s32.totalorder %s176, %s178
      %p182 = scmp.eq.s32.totalorder %s27, 0
      %p183 = por %p181, %p182
      %p184 = scmp.ne.s32.totalorder %s176, %s178
      %p185 = scmp.eq.s32.totalorder %s32, 1
      %p186 = por %p184, %p185
      %p187 = scmp.ne.s32.totalorder %s178, %s179
      %p188 = scmp.eq.s32.totalorder %s32, 0
      %p189 = por %p187, %p188
      %p190 = scmp.ne.s32.totalorder %s178, %s179
      %p191 = scmp.eq.s32.totalorder %s33, 1
      %p192 = por %p190, %p191
      %p194 = scmp.ne.s32.totalorder %s179, %s193
      %p195 = scmp.eq.s32.totalorder %s33, 0
      %p196 = por %p194, %p195
      %s198 = sadd.s32 %s197, 1
      %p201 = scmp.eq.s32.totalorder %s27, 1
      %p202 = scmp.ne.s32.totalorder %s197, %s199
      %p203 = scmp.eq.s32.totalorder %s27, 0
      %p204 = por %p202, %p203
      %p205 = scmp.ne.s32.totalorder %s197, %s199
      %p206 = scmp.eq.s32.totalorder %s32, 1
      %p207 = por %p205, %p206
      %p208 = scmp.ne.s32.totalorder %s199, %s200
      %p209 = scmp.eq.s32.totalorder %s32, 0
      %p210 = por %p208, %p209
      %p211 = scmp.ne.s32.totalorder %s199, %s200
      %p212 = scmp.eq.s32.totalorder %s33, 1
      %p213 = por %p211, %p212
      %p215 = scmp.ne.s32.totalorder %s200, %s214
      %p216 = scmp.eq.s32.totalorder %s33, 0
      %p217 = por %p215, %p216
      %s219 = sadd.s32 %s218, 1
      %p222 = scmp.eq.s32.totalorder %s27, 1
      %p223 = scmp.ne.s32.totalorder %s218, %s220
      %p224 = scmp.eq.s32.totalorder %s27, 0
      %p225 = por %p223, %p224
      %p226 = scmp.ne.s32.totalorder %s218, %s220
      %p227 = scmp.eq.s32.totalorder %s32, 1
      %p228 = por %p226, %p227
      %p229 = scmp.ne.s32.totalorder %s220, %s221
      %p230 = scmp.eq.s32.totalorder %s32, 0
      %p231 = por %p229, %p230
      %p232 = scmp.ne.s32.totalorder %s220, %s221
      %p233 = scmp.eq.s32.totalorder %s33, 1
      %p234 = por %p232, %p233
      %p236 = scmp.ne.s32.totalorder %s221, %s235
      %p237 = scmp.eq.s32.totalorder %s33, 0
      %p238 = por %p236, %p237
      %s240 = sadd.s32 %s239, 1
      %p243 = scmp.eq.s32.totalorder %s27, 1
      %p244 = scmp.ne.s32.totalorder %s239, %s241
      %p245 = scmp.eq.s32.totalorder %s27, 0
      %p246 = por %p244, %p245
      %p247 = scmp.ne.s32.totalorder %s239, %s241
      %p248 = scmp.eq.s32.totalorder %s32, 1
      %p249 = por %p247, %p248
      %p250 = scmp.ne.s32.totalorder %s241, %s242
      %p251 = scmp.eq.s32.totalorder %s32, 0
      %p252 = por %p250, %p251
      %p253 = scmp.ne.s32.totalorder %s241, %s242
      %p254 = scmp.eq.s32.totalorder %s33, 1
      %p255 = por %p253, %p254
      %p257 = scmp.ne.s32.totalorder %s242, %s256
      %p258 = scmp.eq.s32.totalorder %s33, 0
      %p259 = por %p257, %p258
      %s260 = ssub.s32 %s27, %s34
      %p261 = scmp.eq.s32.totalorder %s260, 0
      %s263 = sadd.s32 %s262, 1
      %s264 = scalar_select %p261, %s262, %s263
      %p267 = pneg %p261
      %p268 = scmp.eq.s32.totalorder %s27, 1
      %p269 = por %p267, %p268
      %p270 = scmp.ne.s32.totalorder %s262, %s265
      %p271 = scmp.eq.s32.totalorder %s27, 0
      %p272 = por %p270, %p271
      %p273 = scmp.ne.s32.totalorder %s262, %s265
      %p274 = scmp.eq.s32.totalorder %s32, 1
      %p275 = por %p273, %p274
      %p276 = scmp.ne.s32.totalorder %s265, %s266
      %p277 = scmp.eq.s32.totalorder %s32, 0
      %p278 = por %p276, %p277
      %p279 = scmp.ne.s32.totalorder %s265, %s266
      %p280 = scmp.eq.s32.totalorder %s33, 1
      %p281 = por %p279, %p280
      %p283 = scmp.ne.s32.totalorder %s266, %s282
      %p284 = scmp.eq.s32.totalorder %s33, 0
      %p285 = por %p283, %p284
      %p286 = scmp.le.s32.totalorder 1, %s27
      %p287 = scmp.lt.s32.totalorder %s27, 3
      %p288 = pnand %p286, %p287
      %p289 = pneg %p288
      // Predicated region
      $region9: #{tpu_custom_call.1} parent=5 // pred_check
        _
      $region10: #{tpu_custom_call.1} parent=5 // pred_check_branch
        %291 = sbr.rel (%p288) target = $region12
      $region11: #{tpu_custom_call.1} parent=5 // pred_region
        %s292 = ssub.s32 %s27, 1
        // Predicated region
        $region13: #{tpu_custom_call.1} parent=11 // pred_check
          %p293 = pneg %p126
        $region14: #{tpu_custom_call.1} parent=11 // pred_check_branch
          %295 = sbr.rel (%p293) target = $region16
        $region15: #{tpu_custom_call.1} parent=11 // pred_region
          _
        $region16: #{tpu_custom_call.1} parent=11 // pred_fallthru
          _
        // Predicated region
        $region17: #{tpu_custom_call.1} parent=11 // pred_check
          %p296 = pneg %p147
        $region18: #{tpu_custom_call.1} parent=11 // pred_check_branch
          %298 = sbr.rel (%p296) target = $region20
        $region19: #{tpu_custom_call.1} parent=11 // pred_region
          _
        $region20: #{tpu_custom_call.1} parent=11 // pred_fallthru
          _
        // Predicated region
        $region21: #{tpu_custom_call.1} parent=11 // pred_check
          %p299 = pneg %p168
        $region22: #{tpu_custom_call.1} parent=11 // pred_check_branch
          %301 = sbr.rel (%p299) target = $region24
        $region23: #{tpu_custom_call.1} parent=11 // pred_region
          %s303 = ssub.s32 1024, 1024
          %304 = vsyncadd [#allocation10], %s303
          %s305 = sshll.u32 [#allocation9], 4
          %s306 = int_to_ptr.vmem [resolvable:$true] %s305
          %311 = dma.hbm_to_vmem [thread:$0]  %s5, 1024, %s306, [#allocation10], 64, 64, 4
        $region24: #{tpu_custom_call.1} parent=11 // pred_fallthru
          _
        // Predicated region
        $region25: #{tpu_custom_call.1} parent=11 // pred_check
          %p312 = pneg %p189
        $region26: #{tpu_custom_call.1} parent=11 // pred_check_branch
          %314 = sbr.rel (%p312) target = $region28
        $region27: #{tpu_custom_call.1} parent=11 // pred_region
          %s316 = ssub.s32 1024, 1024
          %317 = vsyncadd [#allocation10], %s316
          %s318 = sshll.u32 [#allocation11], 4
          %s319 = int_to_ptr.vmem [resolvable:$true] %s318
          %324 = dma.hbm_to_vmem [thread:$0]  %s6, 1024, %s319, [#allocation10], 64, 64, 4
        $region28: #{tpu_custom_call.1} parent=11 // pred_fallthru
          _
        // Predicated region
        $region29: #{tpu_custom_call.1} parent=11 // pred_check
          %p325 = pneg %p210
        $region30: #{tpu_custom_call.1} parent=11 // pred_check_branch
          %327 = sbr.rel (%p325) target = $region32
        $region31: #{tpu_custom_call.1} parent=11 // pred_region
          %s329 = ssub.s32 1024, 1024
          %330 = vsyncadd [#allocation13], %s329
          %s331 = sshll.u32 [#allocation12], 4
          %s332 = int_to_ptr.vmem [resolvable:$true] %s331
          %337 = dma.hbm_to_vmem [thread:$0]  %s7, 1024, %s332, [#allocation13], 64, 64, 4
        $region32: #{tpu_custom_call.1} parent=11 // pred_fallthru
          _
        // Predicated region
        $region33: #{tpu_custom_call.1} parent=11 // pred_check
          %p338 = pneg %p231
        $region34: #{tpu_custom_call.1} parent=11 // pred_check_branch
          %340 = sbr.rel (%p338) target = $region36
        $region35: #{tpu_custom_call.1} parent=11 // pred_region
          %s342 = ssub.s32 1024, 1024
          %343 = vsyncadd [#allocation13], %s342
          %s344 = sshll.u32 [#allocation14], 4
          %s345 = int_to_ptr.vmem [resolvable:$true] %s344
          %350 = dma.hbm_to_vmem [thread:$0]  %s8, 1024, %s345, [#allocation13], 64, 64, 4
        $region36: #{tpu_custom_call.1} parent=11 // pred_fallthru
          _
        // Predicated region
        $region37: #{tpu_custom_call.1} parent=11 // pred_check
          %p351 = pneg %p252
        $region38: #{tpu_custom_call.1} parent=11 // pred_check_branch
          %353 = sbr.rel (%p351) target = $region40
        $region39: #{tpu_custom_call.1} parent=11 // pred_region
          _
        $region40: #{tpu_custom_call.1} parent=11 // pred_fallthru
          _
      $region12: #{tpu_custom_call.1} parent=5 // pred_fallthru
        _
      %p354 = scmp.lt.s32.totalorder %s27, 2
      // Predicated region
      $region41: #{tpu_custom_call.1} parent=5 // pred_check
        %p355 = pneg %p354
      $region42: #{tpu_custom_call.1} parent=5 // pred_check_branch
        %357 = sbr.rel (%p355) target = $region44
      $region43: #{tpu_custom_call.1} parent=5 // pred_region
        // Predicated region
        $region45: #{tpu_custom_call.1} parent=43 // pred_check
          %p358 = pneg %p47
        $region46: #{tpu_custom_call.1} parent=43 // pred_check_branch
          %360 = sbr.rel (%p358) target = $region48
        $region47: #{tpu_custom_call.1} parent=43 // pred_region
          %s361 = sand.u32 %s37, 1
          %s362 = scalar_lea.sflag [#allocation4], %s361
          %s363 = sand.u32 %s37, 1
          %s364 = smul.addr %s363, 8
          %s365 = scalar_lea.vmem [#allocation3], %s364
          %s367 = ssub.s32 128, 128
          %368 = vsyncadd %s362, %s367
          %s369 = smul.addr %s27, 128
          %s370 = scalar_lea.hbm %s0, %s369
          %s372 = sshll.u32 %s365, 4
          %s373 = int_to_ptr.vmem [resolvable:$true] %s372
          %375 = dma.hbm_to_vmem [thread:$0]  %s370, 128, %s373, %s362
        $region48: #{tpu_custom_call.1} parent=43 // pred_fallthru
          _
        // Predicated region
        $region49: #{tpu_custom_call.1} parent=43 // pred_check
          %p376 = pneg %p73
        $region50: #{tpu_custom_call.1} parent=43 // pred_check_branch
          %378 = sbr.rel (%p376) target = $region52
        $region51: #{tpu_custom_call.1} parent=43 // pred_region
          %s379 = sand.u32 %s27, 1
          %s380 = scalar_lea.sflag [#allocation7], %s379
          %s381 = sand.u32 %s63, 1
          %s382 = smul.addr %s381, 8
          %s383 = scalar_lea.vmem [#allocation6], %s382
          %s385 = ssub.s32 128, 128
          %386 = vsyncadd %s380, %s385
          %s387 = smul.addr %s27, 128
          %s388 = scalar_lea.hbm %s1, %s387
          %s390 = sshll.u32 %s383, 4
          %s391 = int_to_ptr.vmem [resolvable:$true] %s390
          %393 = dma.hbm_to_vmem [thread:$0]  %s388, 128, %s391, %s380
        $region52: #{tpu_custom_call.1} parent=43 // pred_fallthru
          _
        // Predicated region
        $region53: #{tpu_custom_call.1} parent=43 // pred_check
          %p394 = pneg %p99
        $region54: #{tpu_custom_call.1} parent=43 // pred_check_branch
          %396 = sbr.rel (%p394) target = $region56
        $region55: #{tpu_custom_call.1} parent=43 // pred_region
          %s397 = sand.u32 %s27, 1
          %s398 = scalar_lea.sflag [#allocation7], %s397
          %s399 = sand.u32 %s89, 1
          %s400 = smul.addr %s399, 8
          %s401 = scalar_lea.vmem [#allocation8], %s400
          %s403 = ssub.s32 128, 128
          %404 = vsyncadd %s398, %s403
          %s405 = smul.addr %s27, 128
          %s406 = scalar_lea.hbm %s2, %s405
          %s408 = sshll.u32 %s401, 4
          %s409 = int_to_ptr.vmem [resolvable:$true] %s408
          %411 = dma.hbm_to_vmem [thread:$0]  %s406, 128, %s409, %s398
        $region56: #{tpu_custom_call.1} parent=43 // pred_fallthru
          _
      $region44: #{tpu_custom_call.1} parent=5 // pred_fallthru
        _
      %p412 = scmp.le.s32.totalorder 1, %s27
      %p413 = scmp.lt.s32.totalorder %s27, 3
      %p414 = pnand %p412, %p413
      %p415 = pneg %p414
      // Predicated region
      $region57: #{tpu_custom_call.1} parent=5 // pred_check
        _
      $region58: #{tpu_custom_call.1} parent=5 // pred_check_branch
        %417 = sbr.rel (%p414) target = $region60
      $region59: #{tpu_custom_call.1} parent=5 // pred_region
        %s418 = ssub.s32 %s27, 1
        %s419 = sand.u32 %s40, 1
        %s420 = scalar_lea.sflag [#allocation4], %s419
        %s421 = sand.u32 %s40, 1
        %s422 = smul.addr %s421, 8
        %s423 = scalar_lea.vmem [#allocation3], %s422
        // Predicated region
        $region61: #{tpu_custom_call.1} parent=59 // pred_check
          %p424 = pneg %p53
        $region62: #{tpu_custom_call.1} parent=59 // pred_check_branch
          %426 = sbr.rel (%p424) target = $region64
        $region63: #{tpu_custom_call.1} parent=59 // pred_region
          %427 = dma.done %s420, 128
        $region64: #{tpu_custom_call.1} parent=59 // pred_fallthru
          _
        %s428 = sand.u32 %s32, 1
        %s429 = scalar_lea.sflag [#allocation7], %s428
        %s430 = sand.u32 %s66, 1
        %s431 = smul.addr %s430, 8
        %s432 = scalar_lea.vmem [#allocation6], %s431
        // Predicated region
        $region65: #{tpu_custom_call.1} parent=59 // pred_check
          %p433 = pneg %p79
        $region66: #{tpu_custom_call.1} parent=59 // pred_check_branch
          %435 = sbr.rel (%p433) target = $region68
        $region67: #{tpu_custom_call.1} parent=59 // pred_region
          %436 = dma.done %s429, 128
        $region68: #{tpu_custom_call.1} parent=59 // pred_fallthru
          _
        %s437 = sand.u32 %s32, 1
        %s438 = scalar_lea.sflag [#allocation7], %s437
        %s439 = sand.u32 %s92, 1
        %s440 = smul.addr %s439, 8
        %s441 = scalar_lea.vmem [#allocation8], %s440
        // Predicated region
        $region69: #{tpu_custom_call.1} parent=59 // pred_check
          %p442 = pneg %p105
        $region70: #{tpu_custom_call.1} parent=59 // pred_check_branch
          %444 = sbr.rel (%p442) target = $region72
        $region71: #{tpu_custom_call.1} parent=59 // pred_region
          %445 = dma.done %s438, 128
        $region72: #{tpu_custom_call.1} parent=59 // pred_fallthru
          _
        // Predicated region
        $region73: #{tpu_custom_call.1} parent=59 // pred_check
          %p446 = pneg %p168
        $region74: #{tpu_custom_call.1} parent=59 // pred_check_branch
          %448 = sbr.rel (%p446) target = $region76
        $region75: #{tpu_custom_call.1} parent=59 // pred_region
          %449 = dma.done [#allocation10], 1024
        $region76: #{tpu_custom_call.1} parent=59 // pred_fallthru
          _
        // Predicated region
        $region77: #{tpu_custom_call.1} parent=59 // pred_check
          %p450 = pneg %p189
        $region78: #{tpu_custom_call.1} parent=59 // pred_check_branch
          %452 = sbr.rel (%p450) target = $region80
        $region79: #{tpu_custom_call.1} parent=59 // pred_region
          %453 = dma.done [#allocation10], 1024
        $region80: #{tpu_custom_call.1} parent=59 // pred_fallthru
          _
        // Predicated region
        $region81: #{tpu_custom_call.1} parent=59 // pred_check
          %p454 = pneg %p210
        $region82: #{tpu_custom_call.1} parent=59 // pred_check_branch
          %456 = sbr.rel (%p454) target = $region84
        $region83: #{tpu_custom_call.1} parent=59 // pred_region
          %457 = dma.done [#allocation13], 1024
        $region84: #{tpu_custom_call.1} parent=59 // pred_fallthru
          _
        // Predicated region
        $region85: #{tpu_custom_call.1} parent=59 // pred_check
          %p458 = pneg %p231
        $region86: #{tpu_custom_call.1} parent=59 // pred_check_branch
          %460 = sbr.rel (%p458) target = $region88
        $region87: #{tpu_custom_call.1} parent=59 // pred_region
          %461 = dma.done [#allocation13], 1024
        $region88: #{tpu_custom_call.1} parent=59 // pred_fallthru
          _
        %s462 = sand.u32 %s40, 1
        %s463 = scalar_lea.sflag [#allocation4], %s462
        %s464 = sand.u32 %s40, 1
        %s465 = smul.addr %s464, 8
        %s466 = scalar_lea.vmem [#allocation3], %s465
        %p467 = pneg %p53
        %p468 = pneg %p50
        %s469 = sand.u32 %s32, 1
        %s470 = scalar_lea.sflag [#allocation7], %s469
        %s471 = sand.u32 %s66, 1
        %s472 = smul.addr %s471, 8
        %s473 = scalar_lea.vmem [#allocation6], %s472
        %p474 = pneg %p79
        %p475 = pneg %p76
        %s476 = sand.u32 %s32, 1
        %s477 = scalar_lea.sflag [#allocation7], %s476
        %s478 = sand.u32 %s92, 1
        %s479 = smul.addr %s478, 8
        %s480 = scalar_lea.vmem [#allocation8], %s479
        %p481 = pneg %p105
        %p482 = pneg %p102
        %p483 = pneg %p126
        %p484 = pneg %p123
        %p485 = pneg %p147
        %p486 = pneg %p144
        %p487 = pneg %p168
        %p488 = pneg %p165
        %p489 = pneg %p189
        %p490 = pneg %p186
        %p491 = pneg %p210
        %p492 = pneg %p207
        %p493 = pneg %p231
        %p494 = pneg %p228
        %p495 = pneg %p252
        %p496 = pneg %p249
        %p497 = pneg %p278
        %p498 = pneg %p275
        %s499 = sand.u32 %s265, 1
        %s500 = scalar_lea.sflag [#allocation5], %s499
        %s501 = sand.u32 %s265, 1
        %s502 = smul.addr %s501, 8
        %s503 = scalar_lea.vmem [#allocation15], %s502
        %v505 = vld [vmem:[%s3] sm:$0x1]
        %v506 = vld [vmem:[%s4] sm:$0x1]
        %v507 = vld [vmem:[%s423] sm:$0xff]
        %v508 = vld [vmem:[%s432] sm:$0xff]
        %v509 = vld [vmem:[%s441] sm:$0xff]
        %510 = vadd.xlane.f32.xlu0 %v507
        %v511 = vpop.xlane.xlu0 %510
        %v512 = vrcp.pop 128.0
        %v513 = vmul.f32 %v511, %v512
        %v514 = vsub.f32 %v507, %v513
        %v515 = vmul.f32 %v514, %v514
        %516 = vadd.xlane.f32.xlu0 %v515
        %v517 = vpop.xlane.xlu0 %516
        %v518 = vmul.f32 %v517, %v512
        %v519 = vadd.f32 %v518, 1e-05
        %v520 = vrsqrt.pop %v519
        %v521 = vmul.f32 %v514, %v520
        %v523 = vlaneseq
        %v524 = vshrl.u32 %v523, 7
        %v525 = vsub.s32 0, %v524
        %v526 = vrot.slane %v505, %v525
        %v528 = vmul.f32 %v521, %v526
        %v530 = vlaneseq
        %v531 = vshrl.u32 %v530, 7
        %v532 = vsub.s32 0, %v531
        %v533 = vrot.slane %v506, %v532
        %v535 = vadd.f32 %v528, %v533
        %v536 = vpack.c.bf16 %v535, %v535
        %v537 = vld [vmem:[#allocation9] sm:$0xf]
        %v538 = vld [vmem:[#allocation9 + $0x4] sm:$0xf]
        %v539 = vld [vmem:[#allocation9 + $0x8] sm:$0xf]
        %v540 = vld [vmem:[#allocation9 + $0xc] sm:$0xf]
        %v541 = vld [vmem:[#allocation9 + $0x10] sm:$0xf]
        %v542 = vld [vmem:[#allocation9 + $0x14] sm:$0xf]
        %v543 = vld [vmem:[#allocation9 + $0x18] sm:$0xf]
        %v544 = vld [vmem:[#allocation9 + $0x1c] sm:$0xf]
        %v545 = vld [vmem:[#allocation9 + $0x20] sm:$0xf]
        %v546 = vld [vmem:[#allocation9 + $0x24] sm:$0xf]
        %v547 = vld [vmem:[#allocation9 + $0x28] sm:$0xf]
        %v548 = vld [vmem:[#allocation9 + $0x2c] sm:$0xf]
        %v549 = vld [vmem:[#allocation9 + $0x30] sm:$0xf]
        %v550 = vld [vmem:[#allocation9 + $0x34] sm:$0xf]
        %v551 = vld [vmem:[#allocation9 + $0x38] sm:$0xf]
        %v552 = vld [vmem:[#allocation9 + $0x3c] sm:$0xf]
        %v569 = vunpack.c.l.b16 %v537
        %v570 = vunpack.c.l.b16 %v538
        %v571 = vunpack.c.l.b16 %v539
        %v572 = vunpack.c.l.b16 %v540
        %v573 = vunpack.c.l.b16 %v541
        %v574 = vunpack.c.l.b16 %v542
        %v575 = vunpack.c.l.b16 %v543
        %v576 = vunpack.c.l.b16 %v544
        %v577 = vunpack.c.l.b16 %v545
        %v578 = vunpack.c.l.b16 %v546
        %v579 = vunpack.c.l.b16 %v547
        %v580 = vunpack.c.l.b16 %v548
        %v581 = vunpack.c.l.b16 %v549
        %v582 = vunpack.c.l.b16 %v550
        %v583 = vunpack.c.l.b16 %v551
        %v584 = vunpack.c.l.b16 %v552
        %v585 = vpack.c.b16 %v570, %v569
        %v586 = vpack.c.b16 %v572, %v571
        %v587 = vpack.c.b16 %v574, %v573
        %v588 = vpack.c.b16 %v576, %v575
        %v589 = vpack.c.b16 %v578, %v577
        %v590 = vpack.c.b16 %v580, %v579
        %v591 = vpack.c.b16 %v582, %v581
        %v592 = vpack.c.b16 %v584, %v583
        %601 = vmatprep.subr.bf16.mxu0 0
        %602 = vmatpush1.bf16.msra.mxu0 %v585
        %603 = vmatprep.subr.bf16.mxu0 0
        %604 = vmatpush1.bf16.msra.mxu0 %v586
        %605 = vmatprep.subr.bf16.mxu0 0
        %606 = vmatpush1.bf16.msra.mxu0 %v587
        %607 = vmatprep.subr.bf16.mxu0 0
        %608 = vmatpush1.bf16.msra.mxu0 %v588
        %609 = vmatprep.subr.bf16.mxu0 0
        %610 = vmatpush1.bf16.msra.mxu0 %v589
        %611 = vmatprep.subr.bf16.mxu0 0
        %612 = vmatpush1.bf16.msra.mxu0 %v590
        %613 = vmatprep.subr.bf16.mxu0 0
        %614 = vmatpush1.bf16.msra.mxu0 %v591
        %615 = vmatprep.subr.bf16.mxu0 0
        %616 = vmatpush1.bf16.msra.mxu0 %v592
        %617 = vmatprep.subr.bf16.mxu0 0
        %618 = vmatpush1.bf16.msra.mxu0 0
        %619 = vmatprep.subr.bf16.mxu0 0
        %620 = vmatpush1.bf16.msra.mxu0 0
        %621 = vmatprep.subr.bf16.mxu0 0
        %622 = vmatpush1.bf16.msra.mxu0 0
        %623 = vmatprep.subr.bf16.mxu0 0
        %624 = vmatpush1.bf16.msra.mxu0 0
        %625 = vmatprep.subr.bf16.mxu0 0
        %626 = vmatpush1.bf16.msra.mxu0 0
        %627 = vmatprep.subr.bf16.mxu0 0
        %628 = vmatpush1.bf16.msra.mxu0 0
        %629 = vmatprep.subr.bf16.mxu0 0
        %630 = vmatpush1.bf16.msra.mxu0 0
        %631 = vmatprep.subr.bf16.mxu0 0
        %632 = vmatpush1.bf16.msra.mxu0 0
        %633 = vmatprep.mubr.bf16.mxu0 0
        %634 = vmatmul.mubr.bf16.gmra.mrb[0].mxu0 %v536
        %v635 = vpop.f32.mrb[0].mxu0
        %v636 = vadd.f32 0.0, %v635
        %v637 = vpop.f32.mrb[0].mxu0
        %v638 = vpop.f32.mrb[0].mxu0
        %v639 = vpop.f32.mrb[0].mxu0
        %640 = vdwg.mxu0
        %641 = vadd.xlane.f32.xlu0 %v508
        %v642 = vpop.xlane.xlu0 %641
        %v643 = vmul.f32 %v642, %v512
        %v644 = vsub.f32 %v508, %v643
        %v645 = vmul.f32 %v644, %v644
        %646 = vadd.xlane.f32.xlu0 %v645
        %v647 = vpop.xlane.xlu0 %646
        %v648 = vmul.f32 %v647, %v512
        %v649 = vadd.f32 %v648, 1e-05
        %v650 = vrsqrt.pop %v649
        %v651 = vmul.f32 %v644, %v650
        %v652 = vmul.f32 %v651, %v526
        %v653 = vadd.f32 %v652, %v533
        %v654 = vpack.c.bf16 %v653, %v653
        %v655 = vld [vmem:[#allocation11] sm:$0xf]
        %v656 = vld [vmem:[#allocation11 + $0x4] sm:$0xf]
        %v657 = vld [vmem:[#allocation11 + $0x8] sm:$0xf]
        %v658 = vld [vmem:[#allocation11 + $0xc] sm:$0xf]
        %v659 = vld [vmem:[#allocation11 + $0x10] sm:$0xf]
        %v660 = vld [vmem:[#allocation11 + $0x14] sm:$0xf]
        %v661 = vld [vmem:[#allocation11 + $0x18] sm:$0xf]
        %v662 = vld [vmem:[#allocation11 + $0x1c] sm:$0xf]
        %v663 = vld [vmem:[#allocation11 + $0x20] sm:$0xf]
        %v664 = vld [vmem:[#allocation11 + $0x24] sm:$0xf]
        %v665 = vld [vmem:[#allocation11 + $0x28] sm:$0xf]
        %v666 = vld [vmem:[#allocation11 + $0x2c] sm:$0xf]
        %v667 = vld [vmem:[#allocation11 + $0x30] sm:$0xf]
        %v668 = vld [vmem:[#allocation11 + $0x34] sm:$0xf]
        %v669 = vld [vmem:[#allocation11 + $0x38] sm:$0xf]
        %v670 = vld [vmem:[#allocation11 + $0x3c] sm:$0xf]
        %v687 = vunpack.c.l.b16 %v655
        %v688 = vunpack.c.l.b16 %v656
        %v689 = vunpack.c.l.b16 %v657
        %v690 = vunpack.c.l.b16 %v658
        %v691 = vunpack.c.l.b16 %v659
        %v692 = vunpack.c.l.b16 %v660
        %v693 = vunpack.c.l.b16 %v661
        %v694 = vunpack.c.l.b16 %v662
        %v695 = vunpack.c.l.b16 %v663
        %v696 = vunpack.c.l.b16 %v664
        %v697 = vunpack.c.l.b16 %v665
        %v698 = vunpack.c.l.b16 %v666
        %v699 = vunpack.c.l.b16 %v667
        %v700 = vunpack.c.l.b16 %v668
        %v701 = vunpack.c.l.b16 %v669
        %v702 = vunpack.c.l.b16 %v670
        %v703 = vpack.c.b16 %v688, %v687
        %v704 = vpack.c.b16 %v690, %v689
        %v705 = vpack.c.b16 %v692, %v691
        %v706 = vpack.c.b16 %v694, %v693
        %v707 = vpack.c.b16 %v696, %v695
        %v708 = vpack.c.b16 %v698, %v697
        %v709 = vpack.c.b16 %v700, %v699
        %v710 = vpack.c.b16 %v702, %v701
        %719 = vmatprep.subr.bf16.mxu0 0
        %720 = vmatpush1.bf16.msra.mxu0 %v703
        %721 = vmatprep.subr.bf16.mxu0 0
        %722 = vmatpush1.bf16.msra.mxu0 %v704
        %723 = vmatprep.subr.bf16.mxu0 0
        %724 = vmatpush1.bf16.msra.mxu0 %v705
        %725 = vmatprep.subr.bf16.mxu0 0
        %726 = vmatpush1.bf16.msra.mxu0 %v706
        %727 = vmatprep.subr.bf16.mxu0 0
        %728 = vmatpush1.bf16.msra.mxu0 %v707
        %729 = vmatprep.subr.bf16.mxu0 0
        %730 = vmatpush1.bf16.msra.mxu0 %v708
        %731 = vmatprep.subr.bf16.mxu0 0
        %732 = vmatpush1.bf16.msra.mxu0 %v709
        %733 = vmatprep.subr.bf16.mxu0 0
        %734 = vmatpush1.bf16.msra.mxu0 %v710
        %735 = vmatprep.subr.bf16.mxu0 0
        %736 = vmatpush1.bf16.msra.mxu0 0
        %737 = vmatprep.subr.bf16.mxu0 0
        %738 = vmatpush1.bf16.msra.mxu0 0
        %739 = vmatprep.subr.bf16.mxu0 0
        %740 = vmatpush1.bf16.msra.mxu0 0
        %741 = vmatprep.subr.bf16.mxu0 0
        %742 = vmatpush1.bf16.msra.mxu0 0
        %743 = vmatprep.subr.bf16.mxu0 0
        %744 = vmatpush1.bf16.msra.mxu0 0
        %745 = vmatprep.subr.bf16.mxu0 0
        %746 = vmatpush1.bf16.msra.mxu0 0
        %747 = vmatprep.subr.bf16.mxu0 0
        %748 = vmatpush1.bf16.msra.mxu0 0
        %749 = vmatprep.subr.bf16.mxu0 0
        %750 = vmatpush1.bf16.msra.mxu0 0
        %751 = vmatprep.mubr.bf16.mxu0 0
        %752 = vmatmul.mubr.bf16.gmra.mrb[0].mxu0 %v654
        %v753 = vpop.f32.mrb[0].mxu0
        %v754 = vadd.f32 0.0, %v753
        %v755 = vpop.f32.mrb[0].mxu0
        %v756 = vpop.f32.mrb[0].mxu0
        %v757 = vpop.f32.mrb[0].mxu0
        %758 = vdwg.mxu0
        %759 = vadd.xlane.f32.xlu0 %v509
        %v760 = vpop.xlane.xlu0 %759
        %v761 = vmul.f32 %v760, %v512
        %v762 = vsub.f32 %v509, %v761
        %v763 = vmul.f32 %v762, %v762
        %764 = vadd.xlane.f32.xlu0 %v763
        %v765 = vpop.xlane.xlu0 %764
        %v766 = vmul.f32 %v765, %v512
        %v767 = vadd.f32 %v766, 1e-05
        %v768 = vrsqrt.pop %v767
        %v769 = vmul.f32 %v762, %v768
        %v770 = vmul.f32 %v769, %v526
        %v771 = vadd.f32 %v770, %v533
        %v772 = vpack.c.bf16 %v771, %v771
        %v773 = vld [vmem:[#allocation12] sm:$0xf]
        %v774 = vld [vmem:[#allocation12 + $0x4] sm:$0xf]
        %v775 = vld [vmem:[#allocation12 + $0x8] sm:$0xf]
        %v776 = vld [vmem:[#allocation12 + $0xc] sm:$0xf]
        %v777 = vld [vmem:[#allocation12 + $0x10] sm:$0xf]
        %v778 = vld [vmem:[#allocation12 + $0x14] sm:$0xf]
        %v779 = vld [vmem:[#allocation12 + $0x18] sm:$0xf]
        %v780 = vld [vmem:[#allocation12 + $0x1c] sm:$0xf]
        %v781 = vld [vmem:[#allocation12 + $0x20] sm:$0xf]
        %v782 = vld [vmem:[#allocation12 + $0x24] sm:$0xf]
        %v783 = vld [vmem:[#allocation12 + $0x28] sm:$0xf]
        %v784 = vld [vmem:[#allocation12 + $0x2c] sm:$0xf]
        %v785 = vld [vmem:[#allocation12 + $0x30] sm:$0xf]
        %v786 = vld [vmem:[#allocation12 + $0x34] sm:$0xf]
        %v787 = vld [vmem:[#allocation12 + $0x38] sm:$0xf]
        %v788 = vld [vmem:[#allocation12 + $0x3c] sm:$0xf]
        %v805 = vunpack.c.l.b16 %v773
        %v806 = vunpack.c.l.b16 %v774
        %v807 = vunpack.c.l.b16 %v775
        %v808 = vunpack.c.l.b16 %v776
        %v809 = vunpack.c.l.b16 %v777
        %v810 = vunpack.c.l.b16 %v778
        %v811 = vunpack.c.l.b16 %v779
        %v812 = vunpack.c.l.b16 %v780
        %v813 = vunpack.c.l.b16 %v781
        %v814 = vunpack.c.l.b16 %v782
        %v815 = vunpack.c.l.b16 %v783
        %v816 = vunpack.c.l.b16 %v784
        %v817 = vunpack.c.l.b16 %v785
        %v818 = vunpack.c.l.b16 %v786
        %v819 = vunpack.c.l.b16 %v787
        %v820 = vunpack.c.l.b16 %v788
        %v821 = vpack.c.b16 %v806, %v805
        %v822 = vpack.c.b16 %v808, %v807
        %v823 = vpack.c.b16 %v810, %v809
        %v824 = vpack.c.b16 %v812, %v811
        %v825 = vpack.c.b16 %v814, %v813
        %v826 = vpack.c.b16 %v816, %v815
        %v827 = vpack.c.b16 %v818, %v817
        %v828 = vpack.c.b16 %v820, %v819
        %837 = vmatprep.subr.bf16.mxu0 0
        %838 = vmatpush1.bf16.msra.mxu0 %v821
        %839 = vmatprep.subr.bf16.mxu0 0
        %840 = vmatpush1.bf16.msra.mxu0 %v822
        %841 = vmatprep.subr.bf16.mxu0 0
        %842 = vmatpush1.bf16.msra.mxu0 %v823
        %843 = vmatprep.subr.bf16.mxu0 0
        %844 = vmatpush1.bf16.msra.mxu0 %v824
        %845 = vmatprep.subr.bf16.mxu0 0
        %846 = vmatpush1.bf16.msra.mxu0 %v825
        %847 = vmatprep.subr.bf16.mxu0 0
        %848 = vmatpush1.bf16.msra.mxu0 %v826
        %849 = vmatprep.subr.bf16.mxu0 0
        %850 = vmatpush1.bf16.msra.mxu0 %v827
        %851 = vmatprep.subr.bf16.mxu0 0
        %852 = vmatpush1.bf16.msra.mxu0 %v828
        %853 = vmatprep.subr.bf16.mxu0 0
        %854 = vmatpush1.bf16.msra.mxu0 0
        %855 = vmatprep.subr.bf16.mxu0 0
        %856 = vmatpush1.bf16.msra.mxu0 0
        %857 = vmatprep.subr.bf16.mxu0 0
        %858 = vmatpush1.bf16.msra.mxu0 0
        %859 = vmatprep.subr.bf16.mxu0 0
        %860 = vmatpush1.bf16.msra.mxu0 0
        %861 = vmatprep.subr.bf16.mxu0 0
        %862 = vmatpush1.bf16.msra.mxu0 0
        %863 = vmatprep.subr.bf16.mxu0 0
        %864 = vmatpush1.bf16.msra.mxu0 0
        %865 = vmatprep.subr.bf16.mxu0 0
        %866 = vmatpush1.bf16.msra.mxu0 0
        %867 = vmatprep.subr.bf16.mxu0 0
        %868 = vmatpush1.bf16.msra.mxu0 0
        %869 = vmatprep.mubr.bf16.mxu0 0
        %870 = vmatmul.mubr.bf16.gmra.mrb[0].mxu0 %v772
        %v871 = vpop.f32.mrb[0].mxu0
        %v872 = vadd.f32 0.0, %v871
        %v873 = vpop.f32.mrb[0].mxu0
        %v874 = vpop.f32.mrb[0].mxu0
        %v875 = vpop.f32.mrb[0].mxu0
        %876 = vdwg.mxu0
        %v877 = vpack.c.bf16 %v636, %v636
        %v878 = vpack.c.bf16 %v754, %v754
        %v879 = vpack.c.bf16 %v872, %v872
        %880 = vmatprep.subr.bf16.mxu0 0
        %881 = vmatpush1.bf16.xpose.msra.mxu0 %v878
        %882 = vmatprep.subr.bf16.mxu0 0
        %883 = vmatpush1.bf16.xpose.msra.mxu0 0
        %884 = vmatprep.subr.bf16.mxu0 0
        %885 = vmatpush1.bf16.xpose.msra.mxu0 0
        %886 = vmatprep.subr.bf16.mxu0 0
        %887 = vmatpush1.bf16.xpose.msra.mxu0 0
        %888 = vmatprep.subr.bf16.mxu0 0
        %889 = vmatpush1.bf16.xpose.msra.mxu0 0
        %890 = vmatprep.subr.bf16.mxu0 0
        %891 = vmatpush1.bf16.xpose.msra.mxu0 0
        %892 = vmatprep.subr.bf16.mxu0 0
        %893 = vmatpush1.bf16.xpose.msra.mxu0 0
        %894 = vmatprep.subr.bf16.mxu0 0
        %895 = vmatpush1.bf16.xpose.msra.mxu0 0
        %896 = vmatprep.subr.bf16.mxu0 0
        %897 = vmatpush1.bf16.xpose.msra.mxu0 0
        %898 = vmatprep.subr.bf16.mxu0 0
        %899 = vmatpush1.bf16.xpose.msra.mxu0 0
        %900 = vmatprep.subr.bf16.mxu0 0
        %901 = vmatpush1.bf16.xpose.msra.mxu0 0
        %902 = vmatprep.subr.bf16.mxu0 0
        %903 = vmatpush1.bf16.xpose.msra.mxu0 0
        %904 = vmatprep.subr.bf16.mxu0 0
        %905 = vmatpush1.bf16.xpose.msra.mxu0 0
        %906 = vmatprep.subr.bf16.mxu0 0
        %907 = vmatpush1.bf16.xpose.msra.mxu0 0
        %908 = vmatprep.subr.bf16.mxu0 0
        %909 = vmatpush1.bf16.xpose.msra.mxu0 0
        %910 = vmatprep.subr.bf16.mxu0 0
        %911 = vmatpush1.bf16.xpose.msra.mxu0 0
        %912 = vmatprep.mubr.bf16.mxu0 0
        %913 = vmatmul.mubr.bf16.gmra.mrb[0].mxu0 %v877
        %v914 = vpop.f32.mrb[0].mxu0
        %v915 = vadd.f32 0.0, %v914
        %v916 = vpop.f32.mrb[0].mxu0
        %v917 = vpop.f32.mrb[0].mxu0
        %v918 = vpop.f32.mrb[0].mxu0
        %919 = vdwg.mxu0
        %vm920 = vcmask 64512
        %v921 = vsel %vm920, %v915, -inf
        %922 = vmax.xlane.f32.xlu0 %v921
        %v923 = vpop.xlane.xlu0 %922
        %v924 = vsub.f32 %v915, %v923
        %v925 = vmul.f32 %v924, 1.442695
        %v926 = vpow.pop %v925
        %v927 = vsel %vm920, %v926, 0.0
        %928 = vadd.xlane.f32.xlu0 %v927
        %v929 = vpop.xlane.xlu0 %928
        %v930 = vrcp.pop %v929
        %v931 = vmul.f32 %v926, %v930
        %v932 = vpack.c.bf16 %v931, %v931
        %v934 = vsel %vm920, %v932, 0
        %vm936 = vcmask 1043456
        %v938 = vsel %vm936, %v879, 0
        %940 = vmatprep.subr.bf16.mxu0 0
        %941 = vmatpush1.bf16.msra.mxu0 %v938
        %942 = vmatprep.subr.bf16.mxu0 0
        %943 = vmatpush1.bf16.msra.mxu0 0
        %944 = vmatprep.subr.bf16.mxu0 0
        %945 = vmatpush1.bf16.msra.mxu0 0
        %946 = vmatprep.subr.bf16.mxu0 0
        %947 = vmatpush1.bf16.msra.mxu0 0
        %948 = vmatprep.subr.bf16.mxu0 0
        %949 = vmatpush1.bf16.msra.mxu0 0
        %950 = vmatprep.subr.bf16.mxu0 0
        %951 = vmatpush1.bf16.msra.mxu0 0
        %952 = vmatprep.subr.bf16.mxu0 0
        %953 = vmatpush1.bf16.msra.mxu0 0
        %954 = vmatprep.subr.bf16.mxu0 0
        %955 = vmatpush1.bf16.msra.mxu0 0
        %956 = vmatprep.subr.bf16.mxu0 0
        %957 = vmatpush1.bf16.msra.mxu0 0
        %958 = vmatprep.subr.bf16.mxu0 0
        %959 = vmatpush1.bf16.msra.mxu0 0
        %960 = vmatprep.subr.bf16.mxu0 0
        %961 = vmatpush1.bf16.msra.mxu0 0
        %962 = vmatprep.subr.bf16.mxu0 0
        %963 = vmatpush1.bf16.msra.mxu0 0
        %964 = vmatprep.subr.bf16.mxu0 0
        %965 = vmatpush1.bf16.msra.mxu0 0
        %966 = vmatprep.subr.bf16.mxu0 0
        %967 = vmatpush1.bf16.msra.mxu0 0
        %968 = vmatprep.subr.bf16.mxu0 0
        %969 = vmatpush1.bf16.msra.mxu0 0
        %970 = vmatprep.subr.bf16.mxu0 0
        %971 = vmatpush1.bf16.msra.mxu0 0
        %972 = vmatprep.mubr.bf16.mxu0 0
        %973 = vmatmul.mubr.bf16.gmra.mrb[0].mxu0 %v934
        %v974 = vpop.f32.mrb[0].mxu0
        %v975 = vadd.f32 0.0, %v974
        %v976 = vpop.f32.mrb[0].mxu0
        %v977 = vpop.f32.mrb[0].mxu0
        %v978 = vpop.f32.mrb[0].mxu0
        %979 = vdwg.mxu0
        %980 = vst [vmem:[#allocation2] sm:$0xff] %v975
        %v981 = vld [vmem:[#allocation2] sm:$0xff]
        %v982 = vpack.c.bf16 %v981, %v981
        %v983 = vld [vmem:[#allocation14] sm:$0xf]
        %v984 = vld [vmem:[#allocation14 + $0x4] sm:$0xf]
        %v985 = vld [vmem:[#allocation14 + $0x8] sm:$0xf]
        %v986 = vld [vmem:[#allocation14 + $0xc] sm:$0xf]
        %v987 = vld [vmem:[#allocation14 + $0x10] sm:$0xf]
        %v988 = vld [vmem:[#allocation14 + $0x14] sm:$0xf]
        %v989 = vld [vmem:[#allocation14 + $0x18] sm:$0xf]
        %v990 = vld [vmem:[#allocation14 + $0x1c] sm:$0xf]
        %v991 = vld [vmem:[#allocation14 + $0x20] sm:$0xf]
        %v992 = vld [vmem:[#allocation14 + $0x24] sm:$0xf]
        %v993 = vld [vmem:[#allocation14 + $0x28] sm:$0xf]
        %v994 = vld [vmem:[#allocation14 + $0x2c] sm:$0xf]
        %v995 = vld [vmem:[#allocation14 + $0x30] sm:$0xf]
        %v996 = vld [vmem:[#allocation14 + $0x34] sm:$0xf]
        %v997 = vld [vmem:[#allocation14 + $0x38] sm:$0xf]
        %v998 = vld [vmem:[#allocation14 + $0x3c] sm:$0xf]
        %v999 = vld [vmem:[%s9] sm:$0x1]
        %v1001 = vlaneseq
        %v1002 = vshrl.u32 %v1001, 7
        %v1003 = vsub.s32 0, %v1002
        %v1004 = vrot.slane %v999, %v1003
        %v1022 = vunpack.c.l.b16 %v983
        %v1023 = vunpack.c.l.b16 %v984
        %v1024 = vunpack.c.l.b16 %v985
        %v1025 = vunpack.c.l.b16 %v986
        %v1026 = vunpack.c.l.b16 %v987
        %v1027 = vunpack.c.l.b16 %v988
        %v1028 = vunpack.c.l.b16 %v989
        %v1029 = vunpack.c.l.b16 %v990
        %v1030 = vunpack.c.l.b16 %v991
        %v1031 = vunpack.c.l.b16 %v992
        %v1032 = vunpack.c.l.b16 %v993
        %v1033 = vunpack.c.l.b16 %v994
        %v1034 = vunpack.c.l.b16 %v995
        %v1035 = vunpack.c.l.b16 %v996
        %v1036 = vunpack.c.l.b16 %v997
        %v1037 = vunpack.c.l.b16 %v998
        %v1038 = vpack.c.b16 %v1023, %v1022
        %v1039 = vpack.c.b16 %v1025, %v1024
        %v1040 = vpack.c.b16 %v1027, %v1026
        %v1041 = vpack.c.b16 %v1029, %v1028
        %v1042 = vpack.c.b16 %v1031, %v1030
        %v1043 = vpack.c.b16 %v1033, %v1032
        %v1044 = vpack.c.b16 %v1035, %v1034
        %v1045 = vpack.c.b16 %v1037, %v1036
        %1054 = vmatprep.subr.bf16.mxu0 0
        %1055 = vmatpush1.bf16.msra.mxu0 %v1038
        %1056 = vmatprep.subr.bf16.mxu0 0
        %1057 = vmatpush1.bf16.msra.mxu0 %v1039
        %1058 = vmatprep.subr.bf16.mxu0 0
        %1059 = vmatpush1.bf16.msra.mxu0 %v1040
        %1060 = vmatprep.subr.bf16.mxu0 0
        %1061 = vmatpush1.bf16.msra.mxu0 %v1041
        %1062 = vmatprep.subr.bf16.mxu0 0
        %1063 = vmatpush1.bf16.msra.mxu0 %v1042
        %1064 = vmatprep.subr.bf16.mxu0 0
        %1065 = vmatpush1.bf16.msra.mxu0 %v1043
        %1066 = vmatprep.subr.bf16.mxu0 0
        %1067 = vmatpush1.bf16.msra.mxu0 %v1044
        %1068 = vmatprep.subr.bf16.mxu0 0
        %1069 = vmatpush1.bf16.msra.mxu0 %v1045
        %1070 = vmatprep.subr.bf16.mxu0 0
        %1071 = vmatpush1.bf16.msra.mxu0 0
        %1072 = vmatprep.subr.bf16.mxu0 0
        %1073 = vmatpush1.bf16.msra.mxu0 0
        %1074 = vmatprep.subr.bf16.mxu0 0
        %1075 = vmatpush1.bf16.msra.mxu0 0
        %1076 = vmatprep.subr.bf16.mxu0 0
        %1077 = vmatpush1.bf16.msra.mxu0 0
        %1078 = vmatprep.subr.bf16.mxu0 0
        %1079 = vmatpush1.bf16.msra.mxu0 0
        %1080 = vmatprep.subr.bf16.mxu0 0
        %1081 = vmatpush1.bf16.msra.mxu0 0
        %1082 = vmatprep.subr.bf16.mxu0 0
        %1083 = vmatpush1.bf16.msra.mxu0 0
        %1084 = vmatprep.subr.bf16.mxu0 0
        %1085 = vmatpush1.bf16.msra.mxu0 0
        %1086 = vmatprep.mubr.bf16.mxu0 0
        %1087 = vmatmul.mubr.bf16.gmra.mrb[0].mxu0 %v982
        %v1088 = vpop.f32.mrb[0].mxu0
        %v1089 = vadd.f32 %v1004, %v1088
        %v1090 = vpop.f32.mrb[0].mxu0
        %v1091 = vpop.f32.mrb[0].mxu0
        %v1092 = vpop.f32.mrb[0].mxu0
        %1093 = vdwg.mxu0
        %v1094 = vadd.f32 %v1089, %v507
        %1095 = vst [vmem:[%s503] sm:$0xff] %v1094
        %s1096 = sand.u32 %s265, 1
        %s1097 = scalar_lea.sflag [#allocation5], %s1096
        %s1098 = sand.u32 %s265, 1
        %s1099 = smul.addr %s1098, 8
        %s1100 = scalar_lea.vmem [#allocation15], %s1099
        // Predicated region
        $region89: #{tpu_custom_call.1} parent=59 // pred_check
          %p1101 = pneg %p275
        $region90: #{tpu_custom_call.1} parent=59 // pred_check_branch
          %1103 = sbr.rel (%p1101) target = $region92
        $region91: #{tpu_custom_call.1} parent=59 // pred_region
          %s1105 = ssub.s32 128, 128
          %1106 = vsyncadd %s1097, %s1105
          %s1107 = smul.addr %s32, 128
          %s1108 = scalar_lea.hbm %s10, %s1107
          %s1110 = sshll.u32 %s1100, 4
          %s1111 = int_to_ptr.vmem [resolvable:$true] %s1110
          %1113 = dma.vmem_to_hbm [thread:$0]  %s1111, 128, %s1108, %s1097
        $region92: #{tpu_custom_call.1} parent=59 // pred_fallthru
          _
      $region60: #{tpu_custom_call.1} parent=5 // pred_fallthru
        _
      %p1114 = scmp.le.s32.totalorder 2, %s27
      // Predicated region
      $region93: #{tpu_custom_call.1} parent=5 // pred_check
        %p1115 = pneg %p1114
      $region94: #{tpu_custom_call.1} parent=5 // pred_check_branch
        %1117 = sbr.rel (%p1115) target = $region96
      $region95: #{tpu_custom_call.1} parent=5 // pred_region
        %s1118 = ssub.s32 %s27, 2
        // Predicated region
        $region97: #{tpu_custom_call.1} parent=95 // pred_check
          %p1119 = pneg %p281
        $region98: #{tpu_custom_call.1} parent=95 // pred_check_branch
          %1121 = sbr.rel (%p1119) target = $region100
        $region99: #{tpu_custom_call.1} parent=95 // pred_region
          %s1122 = sand.u32 %s266, 1
          %s1123 = scalar_lea.sflag [#allocation5], %s1122
          %s1124 = sand.u32 %s266, 1
          %s1125 = smul.addr %s1124, 8
          %s1126 = scalar_lea.vmem [#allocation15], %s1125
          %1127 = dma.done %s1123, 128
        $region100: #{tpu_custom_call.1} parent=95 // pred_fallthru
          _
      $region96: #{tpu_custom_call.1} parent=5 // pred_fallthru
        _
    $region6: #{tpu_custom_call.1} parent=1 // loop_footer
      %s31 = sadd.s32 1, %s27
    $region7: #{tpu_custom_call.1} parent=1 // loop_footer_branch
      %26 = sbr.rel target = $region3
    $region8: #{tpu_custom_call.1} parent=1 // loop_exit
      _
    %1128 = vsyncpa [#allocation4], 1
    %s1129 = scalar_lea.sflag [#allocation4], 1
    %1130 = vsyncpa %s1129, 1
    %1131 = vsyncpa [#allocation7], 1
    %s1132 = scalar_lea.sflag [#allocation7], 1
    %1133 = vsyncpa %s1132, 1
    %1134 = vsyncpa [#allocation10], 1
    %1135 = vsyncpa [#allocation13], 1
    %1136 = vsyncpa [#allocation5], 1
    %s1137 = scalar_lea.sflag [#allocation5], 1
    %1138 = vsyncpa %s1137, 1

// kernel: tpu_custom_call.1
$region0: #{tpu_custom_call.1}
  #allocation0 [shape = 'u32[]', space=smem, size = 0x4, offset = 0x4, fixed_abs, tag = 'smem constant byte address 0x4 - core index']
  #allocation1 [shape = 'u32[144,128]{1,0:T(1,128)}', space=vmem, size = 0x12000, scoped, tag = 'internal scratch']
  #allocation2 [shape = 'f32[1,8,128]{2,1,0:T(8,128)}', space=vmem, size = 0x1000, scoped, tag = 'scratch operand']
  %s0 = inlined_call_operand.hbm [shape: f32[2,8,128], index: 0, kind: input, shape index: {}]
  %s1 = inlined_call_operand.hbm [shape: f32[2,8,128], index: 1, kind: input, shape index: {}]
  %s2 = inlined_call_operand.hbm [shape: f32[2,8,128], index: 2, kind: input, shape index: {}]
  %s3 = inlined_call_operand.vmem [shape: f32[1,128], index: 3, kind: input, shape index: {}]
  %s4 = inlined_call_operand.vmem [shape: f32[1,128], index: 4, kind: input, shape index: {}]
  %s5 = inlined_call_operand.hbm [shape: bf16[128,128], index: 5, kind: input, shape index: {}]
  %s6 = inlined_call_operand.hbm [shape: bf16[128,128], index: 6, kind: input, shape index: {}]
  %s7 = inlined_call_operand.hbm [shape: bf16[128,128], index: 7, kind: input, shape index: {}]
  %s8 = inlined_call_operand.hbm [shape: bf16[128,128], index: 8, kind: input, shape index: {}]
  %s9 = inlined_call_operand.vmem [shape: f32[1,128], index: 9, kind: input, shape index: {}]
  %s10 = inlined_call_operand.hbm [shape: f32[2,8,128], index: 10, kind: output, shape index: {}]
  %s11 = sld [smem:[#allocation0]]
  $region101: #{tpu_custom_call.1} parent=0
    _
  %s13 = ssub.s32 1, %s11
  %s14 = scalar_select 0, %s13, %s11
  $region1: #{tpu_custom_call.1} parent=0
    #allocation3 [shape = 'u8[8192]{0}', space=vmem, size = 0x2000, scoped, tag = 'input window, operand 0']
    #allocation4 [shape = 's32[2]{0}', space=sflag, size = 0x8, scoped, tag = 'scoped memory for tpu_custom_call.1']
    #allocation5 [shape = 's32[2]{0}', space=sflag, size = 0x8, scoped, tag = 'scoped memory for tpu_custom_call.1']
    #allocation6 [shape = 'u8[8192]{0}', space=vmem, size = 0x2000, scoped, tag = 'input window, operand 1']
    #allocation7 [shape = 's32[2]{0}', space=sflag, size = 0x8, scoped, tag = 'scoped memory for tpu_custom_call.1']
    #allocation8 [shape = 'u8[8192]{0}', space=vmem, size = 0x2000, scoped, tag = 'input window, operand 2']
    #allocation9 [shape = 'u8[32768]{0}', space=vmem, size = 0x8000, scoped, tag = 'input window, operand 5, single buffered']
    #allocation10 [shape = 's32[1]{0}', space=sflag, size = 0x4, scoped, tag = 'scoped memory for tpu_custom_call.1']
    #allocation11 [shape = 'u8[32768]{0}', space=vmem, size = 0x8000, scoped, tag = 'input window, operand 6, single buffered']
    #allocation12 [shape = 'u8[32768]{0}', space=vmem, size = 0x8000, scoped, tag = 'input window, operand 7, single buffered']
    #allocation13 [shape = 's32[1]{0}', space=sflag, size = 0x4, scoped, tag = 'scoped memory for tpu_custom_call.1']
    #allocation14 [shape = 'u8[32768]{0}', space=vmem, size = 0x8000, scoped, tag = 'input window, operand 8, single buffered']
    #allocation15 [shape = 'u8[8192]{0}', space=vmem, size = 0x2000, scoped, tag = 'output window, operand 0']
    %15 = vsyncpa [#allocation4], 0
    %s16 = scalar_lea.sflag [#allocation4], 1
    %17 = vsyncpa %s16, 0
    %18 = vsyncpa [#allocation7], 0
    %s19 = scalar_lea.sflag [#allocation7], 1
    %20 = vsyncpa %s19, 0
    %21 = vsyncpa [#allocation10], 0
    %22 = vsyncpa [#allocation13], 0
    %23 = vsyncpa [#allocation5], 0
    %s24 = scalar_lea.sflag [#allocation5], 1
    %25 = vsyncpa %s24, 0
    loop: start=0, step=1, limit=4
    $region2: #{tpu_custom_call.1} parent=1 // loop_pre_header
      _
    $region3: #{tpu_custom_call.1} parent=1 // loop_header
      %s27 = sphi 0, %s31
      %p28 = scmp.ge.s32.totalorder %s27, 4
      %s37 = sphi 0, %s39
      %s40 = sphi 0, %s37
      %s41 = sphi 0, %s40
      %s57 = sphi 0, %s41
      %s63 = sphi 0, %s65
      %s66 = sphi 0, %s63
      %s67 = sphi 0, %s66
      %s83 = sphi 0, %s67
      %s89 = sphi 0, %s91
      %s92 = sphi 0, %s89
      %s93 = sphi 0, %s92
      %s109 = sphi 0, %s93
      %s113 = sphi 0, %s113
      %s115 = sphi 0, %s113
      %s116 = sphi 0, %s115
      %s130 = sphi 0, %s116
      %s134 = sphi 0, %s134
      %s136 = sphi 0, %s134
      %s137 = sphi 0, %s136
      %s151 = sphi 0, %s137
      %s155 = sphi 0, %s155
      %s157 = sphi 0, %s155
      %s158 = sphi 0, %s157
      %s172 = sphi 0, %s158
      %s176 = sphi 0, %s176
      %s178 = sphi 0, %s176
      %s179 = sphi 0, %s178
      %s193 = sphi 0, %s179
      %s197 = sphi 0, %s197
      %s199 = sphi 0, %s197
      %s200 = sphi 0, %s199
      %s214 = sphi 0, %s200
      %s218 = sphi 0, %s218
      %s220 = sphi 0, %s218
      %s221 = sphi 0, %s220
      %s235 = sphi 0, %s221
      %s239 = sphi 0, %s239
      %s241 = sphi 0, %s239
      %s242 = sphi 0, %s241
      %s256 = sphi 0, %s242
      %s262 = sphi 0, %s264
      %s265 = sphi 0, %s262
      %s266 = sphi 0, %s265
      %s282 = sphi 0, %s266
    $region4: #{tpu_custom_call.1} parent=1 // loop_header_branch
      %30 = sbr.rel (%p28) target = $region8
    $region5: #{tpu_custom_call.1} parent=1 // loop_body
      %s32 = ssub.s32 %s27, 1
      %s33 = ssub.s32 %s27, 2
      %s34 = sadd.s32 %s27, 1
      %s35 = ssub.s32 %s27, %s34
      %p36 = scmp.eq.s32.totalorder %s35, 0
      %s38 = sadd.s32 %s37, 1
      %s39 = scalar_select %p36, %s37, %s38
      %p42 = pneg %p36
      %p43 = scmp.eq.s32.totalorder %s27, 1
      %p44 = por %p42, %p43
      %p45 = scmp.ne.s32.totalorder %s37, %s40
      %p46 = scmp.eq.s32.totalorder %s27, 0
      %p47 = por %p45, %p46
      %p48 = scmp.ne.s32.totalorder %s37, %s40
      %p49 = scmp.eq.s32.totalorder %s32, 1
      %p50 = por %p48, %p49
      %p51 = scmp.ne.s32.totalorder %s40, %s41
      %p52 = scmp.eq.s32.totalorder %s32, 0
      %p53 = por %p51, %p52
      %p54 = scmp.ne.s32.totalorder %s40, %s41
      %p55 = scmp.eq.s32.totalorder %s33, 1
      %p56 = por %p54, %p55
      %p58 = scmp.ne.s32.totalorder %s41, %s57
      %p59 = scmp.eq.s32.totalorder %s33, 0
      %p60 = por %p58, %p59
      %s61 = ssub.s32 %s27, %s34
      %p62 = scmp.eq.s32.totalorder %s61, 0
      %s64 = sadd.s32 %s63, 1
      %s65 = scalar_select %p62, %s63, %s64
      %p68 = pneg %p62
      %p69 = scmp.eq.s32.totalorder %s27, 1
      %p70 = por %p68, %p69
      %p71 = scmp.ne.s32.totalorder %s63, %s66
      %p72 = scmp.eq.s32.totalorder %s27, 0
      %p73 = por %p71, %p72
      %p74 = scmp.ne.s32.totalorder %s63, %s66
      %p75 = scmp.eq.s32.totalorder %s32, 1
      %p76 = por %p74, %p75
      %p77 = scmp.ne.s32.totalorder %s66, %s67
      %p78 = scmp.eq.s32.totalorder %s32, 0
      %p79 = por %p77, %p78
      %p80 = scmp.ne.s32.totalorder %s66, %s67
      %p81 = scmp.eq.s32.totalorder %s33, 1
      %p82 = por %p80, %p81
      %p84 = scmp.ne.s32.totalorder %s67, %s83
      %p85 = scmp.eq.s32.totalorder %s33, 0
      %p86 = por %p84, %p85
      %s87 = ssub.s32 %s27, %s34
      %p88 = scmp.eq.s32.totalorder %s87, 0
      %s90 = sadd.s32 %s89, 1
      %s91 = scalar_select %p88, %s89, %s90
      %p94 = pneg %p88
      %p95 = scmp.eq.s32.totalorder %s27, 1
      %p96 = por %p94, %p95
      %p97 = scmp.ne.s32.totalorder %s89, %s92
      %p98 = scmp.eq.s32.totalorder %s27, 0
      %p99 = por %p97, %p98
      %p100 = scmp.ne.s32.totalorder %s89, %s92
      %p101 = scmp.eq.s32.totalorder %s32, 1
      %p102 = por %p100, %p101
      %p103 = scmp.ne.s32.totalorder %s92, %s93
      %p104 = scmp.eq.s32.totalorder %s32, 0
      %p105 = por %p103, %p104
      %p106 = scmp.ne.s32.totalorder %s92, %s93
      %p107 = scmp.eq.s32.totalorder %s33, 1
      %p108 = por %p106, %p107
      %p110 = scmp.ne.s32.totalorder %s93, %s109
      %p111 = scmp.eq.s32.totalorder %s33, 0
      %p112 = por %p110, %p111
      %s114 = sadd.s32 %s113, 1
      %p117 = scmp.eq.s32.totalorder %s27, 1
      %p118 = scmp.ne.s32.totalorder %s113, %s115
      %p119 = scmp.eq.s32.totalorder %s27, 0
      %p120 = por %p118, %p119
      %p121 = scmp.ne.s32.totalorder %s113, %s115
      %p122 = scmp.eq.s32.totalorder %s32, 1
      %p123 = por %p121, %p122
      %p124 = scmp.ne.s32.totalorder %s115, %s116
      %p125 = scmp.eq.s32.totalorder %s32, 0
      %p126 = por %p124, %p125
      %p127 = scmp.ne.s32.totalorder %s115, %s116
      %p128 = scmp.eq.s32.totalorder %s33, 1
      %p129 = por %p127, %p128
      %p131 = scmp.ne.s32.totalorder %s116, %s130
      %p132 = scmp.eq.s32.totalorder %s33, 0
      %p133 = por %p131, %p132
      %s135 = sadd.s32 %s134, 1
      %p138 = scmp.eq.s32.totalorder %s27, 1
      %p139 = scmp.ne.s32.totalorder %s134, %s136
      %p140 = scmp.eq.s32.totalorder %s27, 0
      %p141 = por %p139, %p140
      %p142 = scmp.ne.s32.totalorder %s134, %s136
      %p143 = scmp.eq.s32.totalorder %s32, 1
      %p144 = por %p142, %p143
      %p145 = scmp.ne.s32.totalorder %s136, %s137
      %p146 = scmp.eq.s32.totalorder %s32, 0
      %p147 = por %p145, %p146
      %p148 = scmp.ne.s32.totalorder %s136, %s137
      %p149 = scmp.eq.s32.totalorder %s33, 1
      %p150 = por %p148, %p149
      %p152 = scmp.ne.s32.totalorder %s137, %s151
      %p153 = scmp.eq.s32.totalorder %s33, 0
      %p154 = por %p152, %p153
      %s156 = sadd.s32 %s155, 1
      %p159 = scmp.eq.s32.totalorder %s27, 1
      %p160 = scmp.ne.s32.totalorder %s155, %s157
      %p161 = scmp.eq.s32.totalorder %s27, 0
      %p162 = por %p160, %p161
      %p163 = scmp.ne.s32.totalorder %s155, %s157
      %p164 = scmp.eq.s32.totalorder %s32, 1
      %p165 = por %p163, %p164
      %p166 = scmp.ne.s32.totalorder %s157, %s158
      %p167 = scmp.eq.s32.totalorder %s32, 0
      %p168 = por %p166, %p167
      %p169 = scmp.ne.s32.totalorder %s157, %s158
      %p170 = scmp.eq.s32.totalorder %s33, 1
      %p171 = por %p169, %p170
      %p173 = scmp.ne.s32.totalorder %s158, %s172
      %p174 = scmp.eq.s32.totalorder %s33, 0
      %p175 = por %p173, %p174
      %s177 = sadd.s32 %s176, 1
      %p180 = scmp.eq.s32.totalorder %s27, 1
      %p181 = scmp.ne.s32.totalorder %s176, %s178
      %p182 = scmp.eq.s32.totalorder %s27, 0
      %p183 = por %p181, %p182
      %p184 = scmp.ne.s32.totalorder %s176, %s178
      %p185 = scmp.eq.s32.totalorder %s32, 1
      %p186 = por %p184, %p185
      %p187 = scmp.ne.s32.totalorder %s178, %s179
      %p188 = scmp.eq.s32.totalorder %s32, 0
      %p189 = por %p187, %p188
      %p190 = scmp.ne.s32.totalorder %s178, %s179
      %p191 = scmp.eq.s32.totalorder %s33, 1
      %p192 = por %p190, %p191
      %p194 = scmp.ne.s32.totalorder %s179, %s193
      %p195 = scmp.eq.s32.totalorder %s33, 0
      %p196 = por %p194, %p195
      %s198 = sadd.s32 %s197, 1
      %p201 = scmp.eq.s32.totalorder %s27, 1
      %p202 = scmp.ne.s32.totalorder %s197, %s199
      %p203 = scmp.eq.s32.totalorder %s27, 0
      %p204 = por %p202, %p203
      %p205 = scmp.ne.s32.totalorder %s197, %s199
      %p206 = scmp.eq.s32.totalorder %s32, 1
      %p207 = por %p205, %p206
      %p208 = scmp.ne.s32.totalorder %s199, %s200
      %p209 = scmp.eq.s32.totalorder %s32, 0
      %p210 = por %p208, %p209
      %p211 = scmp.ne.s32.totalorder %s199, %s200
      %p212 = scmp.eq.s32.totalorder %s33, 1
      %p213 = por %p211, %p212
      %p215 = scmp.ne.s32.totalorder %s200, %s214
      %p216 = scmp.eq.s32.totalorder %s33, 0
      %p217 = por %p215, %p216
      %s219 = sadd.s32 %s218, 1
      %p222 = scmp.eq.s32.totalorder %s27, 1
      %p223 = scmp.ne.s32.totalorder %s218, %s220
      %p224 = scmp.eq.s32.totalorder %s27, 0
      %p225 = por %p223, %p224
      %p226 = scmp.ne.s32.totalorder %s218, %s220
      %p227 = scmp.eq.s32.totalorder %s32, 1
      %p228 = por %p226, %p227
      %p229 = scmp.ne.s32.totalorder %s220, %s221
      %p230 = scmp.eq.s32.totalorder %s32, 0
      %p231 = por %p229, %p230
      %p232 = scmp.ne.s32.totalorder %s220, %s221
      %p233 = scmp.eq.s32.totalorder %s33, 1
      %p234 = por %p232, %p233
      %p236 = scmp.ne.s32.totalorder %s221, %s235
      %p237 = scmp.eq.s32.totalorder %s33, 0
      %p238 = por %p236, %p237
      %s240 = sadd.s32 %s239, 1
      %p243 = scmp.eq.s32.totalorder %s27, 1
      %p244 = scmp.ne.s32.totalorder %s239, %s241
      %p245 = scmp.eq.s32.totalorder %s27, 0
      %p246 = por %p244, %p245
      %p247 = scmp.ne.s32.totalorder %s239, %s241
      %p248 = scmp.eq.s32.totalorder %s32, 1
      %p249 = por %p247, %p248
      %p250 = scmp.ne.s32.totalorder %s241, %s242
      %p251 = scmp.eq.s32.totalorder %s32, 0
      %p252 = por %p250, %p251
      %p253 = scmp.ne.s32.totalorder %s241, %s242
      %p254 = scmp.eq.s32.totalorder %s33, 1
      %p255 = por %p253, %p254
      %p257 = scmp.ne.s32.totalorder %s242, %s256
      %p258 = scmp.eq.s32.totalorder %s33, 0
      %p259 = por %p257, %p258
      %s260 = ssub.s32 %s27, %s34
      %p261 = scmp.eq.s32.totalorder %s260, 0
      %s263 = sadd.s32 %s262, 1
      %s264 = scalar_select %p261, %s262, %s263
      %p267 = pneg %p261
      %p268 = scmp.eq.s32.totalorder %s27, 1
      %p269 = por %p267, %p268
      %p270 = scmp.ne.s32.totalorder %s262, %s265
      %p271 = scmp.eq.s32.totalorder %s27, 0
      %p272 = por %p270, %p271
      %p273 = scmp.ne.s32.totalorder %s262, %s265
      %p274 = scmp.eq.s32.totalorder %s32, 1
      %p275 = por %p273, %p274
      %p276 = scmp.ne.s32.totalorder %s265, %s266
      %p277 = scmp.eq.s32.totalorder %s32, 0
      %p278 = por %p276, %p277
      %p279 = scmp.ne.s32.totalorder %s265, %s266
      %p280 = scmp.eq.s32.totalorder %s33, 1
      %p281 = por %p279, %p280
      %p283 = scmp.ne.s32.totalorder %s266, %s282
      %p284 = scmp.eq.s32.totalorder %s33, 0
      %p285 = por %p283, %p284
      %p286 = scmp.le.s32.totalorder 1, %s27
      %p287 = scmp.lt.s32.totalorder %s27, 3
      %p288 = pnand %p286, %p287
      %p289 = pneg %p288
      // Predicated region
      $region9: #{tpu_custom_call.1} parent=5 // pred_check
        _
      $region10: #{tpu_custom_call.1} parent=5 // pred_check_branch
        %291 = sbr.rel (%p288) target = $region12
      $region11: #{tpu_custom_call.1} parent=5 // pred_region
        %s292 = ssub.s32 %s27, 1
        // Predicated region
        $region13: #{tpu_custom_call.1} parent=11 // pred_check
          %p293 = pneg %p126
        $region14: #{tpu_custom_call.1} parent=11 // pred_check_branch
          %295 = sbr.rel (%p293) target = $region16
        $region15: #{tpu_custom_call.1} parent=11 // pred_region
          _
        $region16: #{tpu_custom_call.1} parent=11 // pred_fallthru
          _
        // Predicated region
        $region17: #{tpu_custom_call.1} parent=11 // pred_check
          %p296 = pneg %p147
        $region18: #{tpu_custom_call.1} parent=11 // pred_check_branch
          %298 = sbr.rel (%p296) target = $region20
        $region19: #{tpu_custom_call.1} parent=11 // pred_region
          _
        $region20: #{tpu_custom_call.1} parent=11 // pred_fallthru
          _
        // Predicated region
        $region21: #{tpu_custom_call.1} parent=11 // pred_check
          %p299 = pneg %p168
        $region22: #{tpu_custom_call.1} parent=11 // pred_check_branch
          %301 = sbr.rel (%p299) target = $region24
        $region23: #{tpu_custom_call.1} parent=11 // pred_region
          %s303 = ssub.s32 1024, 1024
          %304 = vsyncadd [#allocation10], %s303
          %s305 = sshll.u32 [#allocation9], 4
          %s306 = int_to_ptr.vmem [resolvable:$true] %s305
          %311 = dma.hbm_to_vmem [thread:$0]  %s5, 1024, %s306, [#allocation10], 64, 64, 4
        $region24: #{tpu_custom_call.1} parent=11 // pred_fallthru
          _
        // Predicated region
        $region25: #{tpu_custom_call.1} parent=11 // pred_check
          %p312 = pneg %p189
        $region26: #{tpu_custom_call.1} parent=11 // pred_check_branch
          %314 = sbr.rel (%p312) target = $region28
        $region27: #{tpu_custom_call.1} parent=11 // pred_region
          %s316 = ssub.s32 1024, 1024
          %317 = vsyncadd [#allocation10], %s316
          %s318 = sshll.u32 [#allocation11], 4
          %s319 = int_to_ptr.vmem [resolvable:$true] %s318
          %324 = dma.hbm_to_vmem [thread:$0]  %s6, 1024, %s319, [#allocation10], 64, 64, 4
        $region28: #{tpu_custom_call.1} parent=11 // pred_fallthru
          _
        // Predicated region
        $region29: #{tpu_custom_call.1} parent=11 // pred_check
          %p325 = pneg %p210
        $region30: #{tpu_custom_call.1} parent=11 // pred_check_branch
          %327 = sbr.rel (%p325) target = $region32
        $region31: #{tpu_custom_call.1} parent=11 // pred_region
          %s329 = ssub.s32 1024, 1024
          %330 = vsyncadd [#allocation13], %s329
          %s331 = sshll.u32 [#allocation12], 4
          %s332 = int_to_ptr.vmem [resolvable:$true] %s331
          %337 = dma.hbm_to_vmem [thread:$0]  %s7, 1024, %s332, [#allocation13], 64, 64, 4
        $region32: #{tpu_custom_call.1} parent=11 // pred_fallthru
          _
        // Predicated region
        $region33: #{tpu_custom_call.1} parent=11 // pred_check
          %p338 = pneg %p231
        $region34: #{tpu_custom_call.1} parent=11 // pred_check_branch
          %340 = sbr.rel (%p338) target = $region36
        $region35: #{tpu_custom_call.1} parent=11 // pred_region
          %s342 = ssub.s32 1024, 1024
          %343 = vsyncadd [#allocation13], %s342
          %s344 = sshll.u32 [#allocation14], 4
          %s345 = int_to_ptr.vmem [resolvable:$true] %s344
          %350 = dma.hbm_to_vmem [thread:$0]  %s8, 1024, %s345, [#allocation13], 64, 64, 4
        $region36: #{tpu_custom_call.1} parent=11 // pred_fallthru
          _
        // Predicated region
        $region37: #{tpu_custom_call.1} parent=11 // pred_check
          %p351 = pneg %p252
        $region38: #{tpu_custom_call.1} parent=11 // pred_check_branch
          %353 = sbr.rel (%p351) target = $region40
        $region39: #{tpu_custom_call.1} parent=11 // pred_region
          _
        $region40: #{tpu_custom_call.1} parent=11 // pred_fallthru
          _
      $region12: #{tpu_custom_call.1} parent=5 // pred_fallthru
        _
      %p354 = scmp.lt.s32.totalorder %s27, 2
      // Predicated region
      $region41: #{tpu_custom_call.1} parent=5 // pred_check
        %p355 = pneg %p354
      $region42: #{tpu_custom_call.1} parent=5 // pred_check_branch
        %357 = sbr.rel (%p355) target = $region44
      $region43: #{tpu_custom_call.1} parent=5 // pred_region
        // Predicated region
        $region45: #{tpu_custom_call.1} parent=43 // pred_check
          %p358 = pneg %p47
        $region46: #{tpu_custom_call.1} parent=43 // pred_check_branch
          %360 = sbr.rel (%p358) target = $region48
        $region47: #{tpu_custom_call.1} parent=43 // pred_region
          %s361 = sand.u32 %s37, 1
          %s362 = scalar_lea.sflag [#allocation4], %s361
          %s363 = sand.u32 %s37, 1
          %s364 = smul.addr %s363, 8
          %s365 = scalar_lea.vmem [#allocation3], %s364
          %s367 = ssub.s32 128, 128
          %368 = vsyncadd %s362, %s367
          %s369 = smul.addr %s27, 128
          %s370 = scalar_lea.hbm %s0, %s369
          %s372 = sshll.u32 %s365, 4
          %s373 = int_to_ptr.vmem [resolvable:$true] %s372
          %375 = dma.hbm_to_vmem [thread:$0]  %s370, 128, %s373, %s362
        $region48: #{tpu_custom_call.1} parent=43 // pred_fallthru
          _
        // Predicated region
        $region49: #{tpu_custom_call.1} parent=43 // pred_check
          %p376 = pneg %p73
        $region50: #{tpu_custom_call.1} parent=43 // pred_check_branch
          %378 = sbr.rel (%p376) target = $region52
        $region51: #{tpu_custom_call.1} parent=43 // pred_region
          %s379 = sand.u32 %s27, 1
          %s380 = scalar_lea.sflag [#allocation7], %s379
          %s381 = sand.u32 %s63, 1
          %s382 = smul.addr %s381, 8
          %s383 = scalar_lea.vmem [#allocation6], %s382
          %s385 = ssub.s32 128, 128
          %386 = vsyncadd %s380, %s385
          %s387 = smul.addr %s27, 128
          %s388 = scalar_lea.hbm %s1, %s387
          %s390 = sshll.u32 %s383, 4
          %s391 = int_to_ptr.vmem [resolvable:$true] %s390
          %393 = dma.hbm_to_vmem [thread:$0]  %s388, 128, %s391, %s380
        $region52: #{tpu_custom_call.1} parent=43 // pred_fallthru
          _
        // Predicated region
        $region53: #{tpu_custom_call.1} parent=43 // pred_check
          %p394 = pneg %p99
        $region54: #{tpu_custom_call.1} parent=43 // pred_check_branch
          %396 = sbr.rel (%p394) target = $region56
        $region55: #{tpu_custom_call.1} parent=43 // pred_region
          %s397 = sand.u32 %s27, 1
          %s398 = scalar_lea.sflag [#allocation7], %s397
          %s399 = sand.u32 %s89, 1
          %s400 = smul.addr %s399, 8
          %s401 = scalar_lea.vmem [#allocation8], %s400
          %s403 = ssub.s32 128, 128
          %404 = vsyncadd %s398, %s403
          %s405 = smul.addr %s27, 128
          %s406 = scalar_lea.hbm %s2, %s405
          %s408 = sshll.u32 %s401, 4
          %s409 = int_to_ptr.vmem [resolvable:$true] %s408
          %411 = dma.hbm_to_vmem [thread:$0]  %s406, 128, %s409, %s398
        $region56: #{tpu_custom_call.1} parent=43 // pred_fallthru
          _
      $region44: #{tpu_custom_call.1} parent=5 // pred_fallthru
        _
      %p412 = scmp.le.s32.totalorder 1, %s27
      %p413 = scmp.lt.s32.totalorder %s27, 3
      %p414 = pnand %p412, %p413
      %p415 = pneg %p414
      // Predicated region
      $region57: #{tpu_custom_call.1} parent=5 // pred_check
        _
      $region58: #{tpu_custom_call.1} parent=5 // pred_check_branch
        %417 = sbr.rel (%p414) target = $region60
      $region59: #{tpu_custom_call.1} parent=5 // pred_region
        %s418 = ssub.s32 %s27, 1
        %s419 = sand.u32 %s40, 1
        %s420 = scalar_lea.sflag [#allocation4], %s419
        %s421 = sand.u32 %s40, 1
        %s422 = smul.addr %s421, 8
        %s423 = scalar_lea.vmem [#allocation3], %s422
        // Predicated region
        $region61: #{tpu_custom_call.1} parent=59 // pred_check
          %p424 = pneg %p53
        $region62: #{tpu_custom_call.1} parent=59 // pred_check_branch
          %426 = sbr.rel (%p424) target = $region64
        $region63: #{tpu_custom_call.1} parent=59 // pred_region
          %427 = dma.done %s420, 128
        $region64: #{tpu_custom_call.1} parent=59 // pred_fallthru
          _
        %s428 = sand.u32 %s32, 1
        %s429 = scalar_lea.sflag [#allocation7], %s428
        %s430 = sand.u32 %s66, 1
        %s431 = smul.addr %s430, 8
        %s432 = scalar_lea.vmem [#allocation6], %s431
        // Predicated region
        $region65: #{tpu_custom_call.1} parent=59 // pred_check
          %p433 = pneg %p79
        $region66: #{tpu_custom_call.1} parent=59 // pred_check_branch
          %435 = sbr.rel (%p433) target = $region68
        $region67: #{tpu_custom_call.1} parent=59 // pred_region
          %436 = dma.done %s429, 128
        $region68: #{tpu_custom_call.1} parent=59 // pred_fallthru
          _
        %s437 = sand.u32 %s32, 1
        %s438 = scalar_lea.sflag [#allocation7], %s437
        %s439 = sand.u32 %s92, 1
        %s440 = smul.addr %s439, 8
        %s441 = scalar_lea.vmem [#allocation8], %s440
        // Predicated region
        $region69: #{tpu_custom_call.1} parent=59 // pred_check
          %p442 = pneg %p105
        $region70: #{tpu_custom_call.1} parent=59 // pred_check_branch
          %444 = sbr.rel (%p442) target = $region72
        $region71: #{tpu_custom_call.1} parent=59 // pred_region
          %445 = dma.done %s438, 128
        $region72: #{tpu_custom_call.1} parent=59 // pred_fallthru
          _
        // Predicated region
        $region73: #{tpu_custom_call.1} parent=59 // pred_check
          %p446 = pneg %p168
        $region74: #{tpu_custom_call.1} parent=59 // pred_check_branch
          %448 = sbr.rel (%p446) target = $region76
        $region75: #{tpu_custom_call.1} parent=59 // pred_region
          %449 = dma.done [#allocation10], 1024
        $region76: #{tpu_custom_call.1} parent=59 // pred_fallthru
          _
        // Predicated region
        $region77: #{tpu_custom_call.1} parent=59 // pred_check
          %p450 = pneg %p189
        $region78: #{tpu_custom_call.1} parent=59 // pred_check_branch
          %452 = sbr.rel (%p450) target = $region80
        $region79: #{tpu_custom_call.1} parent=59 // pred_region
          %453 = dma.done [#allocation10], 1024
        $region80: #{tpu_custom_call.1} parent=59 // pred_fallthru
          _
        // Predicated region
        $region81: #{tpu_custom_call.1} parent=59 // pred_check
          %p454 = pneg %p210
        $region82: #{tpu_custom_call.1} parent=59 // pred_check_branch
          %456 = sbr.rel (%p454) target = $region84
        $region83: #{tpu_custom_call.1} parent=59 // pred_region
          %457 = dma.done [#allocation13], 1024
        $region84: #{tpu_custom_call.1} parent=59 // pred_fallthru
          _
        // Predicated region
        $region85: #{tpu_custom_call.1} parent=59 // pred_check
          %p458 = pneg %p231
        $region86: #{tpu_custom_call.1} parent=59 // pred_check_branch
          %460 = sbr.rel (%p458) target = $region88
        $region87: #{tpu_custom_call.1} parent=59 // pred_region
          %461 = dma.done [#allocation13], 1024
        $region88: #{tpu_custom_call.1} parent=59 // pred_fallthru
          _
        %s462 = sand.u32 %s40, 1
        %s463 = scalar_lea.sflag [#allocation4], %s462
        %s464 = sand.u32 %s40, 1
        %s465 = smul.addr %s464, 8
        %s466 = scalar_lea.vmem [#allocation3], %s465
        %p467 = pneg %p53
        %p468 = pneg %p50
        %s469 = sand.u32 %s32, 1
        %s470 = scalar_lea.sflag [#allocation7], %s469
        %s471 = sand.u32 %s66, 1
        %s472 = smul.addr %s471, 8
        %s473 = scalar_lea.vmem [#allocation6], %s472
        %p474 = pneg %p79
        %p475 = pneg %p76
        %s476 = sand.u32 %s32, 1
        %s477 = scalar_lea.sflag [#allocation7], %s476
        %s478 = sand.u32 %s92, 1
        %s479 = smul.addr %s478, 8
        %s480 = scalar_lea.vmem [#allocation8], %s479
        %p481 = pneg %p105
        %p482 = pneg %p102
        %p483 = pneg %p126
        %p484 = pneg %p123
        %p485 = pneg %p147
        %p486 = pneg %p144
        %p487 = pneg %p168
        %p488 = pneg %p165
        %p489 = pneg %p189
        %p490 = pneg %p186
        %p491 = pneg %p210
        %p492 = pneg %p207
        %p493 = pneg %p231
        %p494 = pneg %p228
        %p495 = pneg %p252
        %p496 = pneg %p249
        %p497 = pneg %p278
        %p498 = pneg %p275
        %s499 = sand.u32 %s265, 1
        %s500 = scalar_lea.sflag [#allocation5], %s499
        %s501 = sand.u32 %s265, 1
        %s502 = smul.addr %s501, 8
        %s503 = scalar_lea.vmem [#allocation15], %s502
        %v505 = vld [vmem:[%s3] sm:$0x1]
        %v506 = vld [vmem:[%s4] sm:$0x1]
        %v507 = vld [vmem:[%s423] sm:$0xff]
        %v508 = vld [vmem:[%s432] sm:$0xff]
        %v509 = vld [vmem:[%s441] sm:$0xff]
        %510 = vadd.xlane.f32.xlu0 %v507
        %v511 = vpop.xlane.xlu0 %510
        %v512 = vrcp.pop 128.0
        %v513 = vmul.f32 %v511, %v512
        %v514 = vsub.f32 %v507, %v513
        %v515 = vmul.f32 %v514, %v514
        %516 = vadd.xlane.f32.xlu0 %v515
        %v517 = vpop.xlane.xlu0 %516
        %v518 = vmul.f32 %v517, %v512
        %v519 = vadd.f32 %v518, 1e-05
        %v520 = vrsqrt.pop %v519
        %v521 = vmul.f32 %v514, %v520
        %v523 = vlaneseq
        %v524 = vshrl.u32 %v523, 7
        %v525 = vsub.s32 0, %v524
        %v526 = vrot.slane %v505, %v525
        %v528 = vmul.f32 %v521, %v526
        %v530 = vlaneseq
        %v531 = vshrl.u32 %v530, 7
        %v532 = vsub.s32 0, %v531
        %v533 = vrot.slane %v506, %v532
        %v535 = vadd.f32 %v528, %v533
        %v536 = vpack.c.bf16 %v535, %v535
        %v537 = vld [vmem:[#allocation9] sm:$0xf]
        %v538 = vld [vmem:[#allocation9 + $0x4] sm:$0xf]
        %v539 = vld [vmem:[#allocation9 + $0x8] sm:$0xf]
        %v540 = vld [vmem:[#allocation9 + $0xc] sm:$0xf]
        %v541 = vld [vmem:[#allocation9 + $0x10] sm:$0xf]
        %v542 = vld [vmem:[#allocation9 + $0x14] sm:$0xf]
        %v543 = vld [vmem:[#allocation9 + $0x18] sm:$0xf]
        %v544 = vld [vmem:[#allocation9 + $0x1c] sm:$0xf]
        %v545 = vld [vmem:[#allocation9 + $0x20] sm:$0xf]
        %v546 = vld [vmem:[#allocation9 + $0x24] sm:$0xf]
        %v547 = vld [vmem:[#allocation9 + $0x28] sm:$0xf]
        %v548 = vld [vmem:[#allocation9 + $0x2c] sm:$0xf]
        %v549 = vld [vmem:[#allocation9 + $0x30] sm:$0xf]
        %v550 = vld [vmem:[#allocation9 + $0x34] sm:$0xf]
        %v551 = vld [vmem:[#allocation9 + $0x38] sm:$0xf]
        %v552 = vld [vmem:[#allocation9 + $0x3c] sm:$0xf]
        %v569 = vunpack.c.l.b16 %v537
        %v570 = vunpack.c.l.b16 %v538
        %v571 = vunpack.c.l.b16 %v539
        %v572 = vunpack.c.l.b16 %v540
        %v573 = vunpack.c.l.b16 %v541
        %v574 = vunpack.c.l.b16 %v542
        %v575 = vunpack.c.l.b16 %v543
        %v576 = vunpack.c.l.b16 %v544
        %v577 = vunpack.c.l.b16 %v545
        %v578 = vunpack.c.l.b16 %v546
        %v579 = vunpack.c.l.b16 %v547
        %v580 = vunpack.c.l.b16 %v548
        %v581 = vunpack.c.l.b16 %v549
        %v582 = vunpack.c.l.b16 %v550
        %v583 = vunpack.c.l.b16 %v551
        %v584 = vunpack.c.l.b16 %v552
        %v585 = vpack.c.b16 %v570, %v569
        %v586 = vpack.c.b16 %v572, %v571
        %v587 = vpack.c.b16 %v574, %v573
        %v588 = vpack.c.b16 %v576, %v575
        %v589 = vpack.c.b16 %v578, %v577
        %v590 = vpack.c.b16 %v580, %v579
        %v591 = vpack.c.b16 %v582, %v581
        %v592 = vpack.c.b16 %v584, %v583
        %601 = vmatprep.subr.bf16.mxu0 0
        %602 = vmatpush1.bf16.msra.mxu0 %v585
        %603 = vmatprep.subr.bf16.mxu0 0
        %604 = vmatpush1.bf16.msra.mxu0 %v586
        %605 = vmatprep.subr.bf16.mxu0 0
        %606 = vmatpush1.bf16.msra.mxu0 %v587
        %607 = vmatprep.subr.bf16.mxu0 0
        %608 = vmatpush1.bf16.msra.mxu0 %v588
        %609 = vmatprep.subr.bf16.mxu0 0
        %610 = vmatpush1.bf16.msra.mxu0 %v589
        %611 = vmatprep.subr.bf16.mxu0 0
        %612 = vmatpush1.bf16.msra.mxu0 %v590
        %613 = vmatprep.subr.bf16.mxu0 0
        %614 = vmatpush1.bf16.msra.mxu0 %v591
        %615 = vmatprep.subr.bf16.mxu0 0
        %616 = vmatpush1.bf16.msra.mxu0 %v592
        %617 = vmatprep.subr.bf16.mxu0 0
        %618 = vmatpush1.bf16.msra.mxu0 0
        %619 = vmatprep.subr.bf16.mxu0 0
        %620 = vmatpush1.bf16.msra.mxu0 0
        %621 = vmatprep.subr.bf16.mxu0 0
        %622 = vmatpush1.bf16.msra.mxu0 0
        %623 = vmatprep.subr.bf16.mxu0 0
        %624 = vmatpush1.bf16.msra.mxu0 0
        %625 = vmatprep.subr.bf16.mxu0 0
        %626 = vmatpush1.bf16.msra.mxu0 0
        %627 = vmatprep.subr.bf16.mxu0 0
        %628 = vmatpush1.bf16.msra.mxu0 0
        %629 = vmatprep.subr.bf16.mxu0 0
        %630 = vmatpush1.bf16.msra.mxu0 0
        %631 = vmatprep.subr.bf16.mxu0 0
        %632 = vmatpush1.bf16.msra.mxu0 0
        %633 = vmatprep.mubr.bf16.mxu0 0
        %634 = vmatmul.mubr.bf16.gmra.mrb[0].mxu0 %v536
        %v635 = vpop.f32.mrb[0].mxu0
        %v636 = vadd.f32 0.0, %v635
        %v637 = vpop.f32.mrb[0].mxu0
        %v638 = vpop.f32.mrb[0].mxu0
        %v639 = vpop.f32.mrb[0].mxu0
        %640 = vdwg.mxu0
        %641 = vadd.xlane.f32.xlu0 %v508
        %v642 = vpop.xlane.xlu0 %641
        %v643 = vmul.f32 %v642, %v512
        %v644 = vsub.f32 %v508, %v643
        %v645 = vmul.f32 %v644, %v644
        %646 = vadd.xlane.f32.xlu0 %v645
        %v647 = vpop.xlane.xlu0 %646
        %v648 = vmul.f32 %v647, %v512
        %v649 = vadd.f32 %v648, 1e-05
        %v650 = vrsqrt.pop %v649
        %v651 = vmul.f32 %v644, %v650
        %v652 = vmul.f32 %v651, %v526
        %v653 = vadd.f32 %v652, %v533
        %v654 = vpack.c.bf16 %v653, %v653
        %v655 = vld [vmem:[#allocation11] sm:$0xf]
        %v656 = vld [vmem:[#allocation11 + $0x4] sm:$0xf]
        %v657 = vld [vmem:[#allocation11 + $0x8] sm:$0xf]
        %v658 = vld [vmem:[#allocation11 + $0xc] sm:$0xf]
        %v659 = vld [vmem:[#allocation11 + $0x10] sm:$0xf]
        %v660 = vld [vmem:[#allocation11 + $0x14] sm:$0xf]
        %v661 = vld [vmem:[#allocation11 + $0x18] sm:$0xf]
        %v662 = vld [vmem:[#allocation11 + $0x1c] sm:$0xf]
        %v663 = vld [vmem:[#allocation11 + $0x20] sm:$0xf]
        %v664 = vld [vmem:[#allocation11 + $0x24] sm:$0xf]
        %v665 = vld [vmem:[#allocation11 + $0x28] sm:$0xf]
        %v666 = vld [vmem:[#allocation11 + $0x2c] sm:$0xf]
        %v667 = vld [vmem:[#allocation11 + $0x30] sm:$0xf]
        %v668 = vld [vmem:[#allocation11 + $0x34] sm:$0xf]
        %v669 = vld [vmem:[#allocation11 + $0x38] sm:$0xf]
        %v670 = vld [vmem:[#allocation11 + $0x3c] sm:$0xf]
        %v687 = vunpack.c.l.b16 %v655
        %v688 = vunpack.c.l.b16 %v656
        %v689 = vunpack.c.l.b16 %v657
        %v690 = vunpack.c.l.b16 %v658
        %v691 = vunpack.c.l.b16 %v659
        %v692 = vunpack.c.l.b16 %v660
        %v693 = vunpack.c.l.b16 %v661
        %v694 = vunpack.c.l.b16 %v662
        %v695 = vunpack.c.l.b16 %v663
        %v696 = vunpack.c.l.b16 %v664
        %v697 = vunpack.c.l.b16 %v665
        %v698 = vunpack.c.l.b16 %v666
        %v699 = vunpack.c.l.b16 %v667
        %v700 = vunpack.c.l.b16 %v668
        %v701 = vunpack.c.l.b16 %v669
        %v702 = vunpack.c.l.b16 %v670
        %v703 = vpack.c.b16 %v688, %v687
        %v704 = vpack.c.b16 %v690, %v689
        %v705 = vpack.c.b16 %v692, %v691
        %v706 = vpack.c.b16 %v694, %v693
        %v707 = vpack.c.b16 %v696, %v695
        %v708 = vpack.c.b16 %v698, %v697
        %v709 = vpack.c.b16 %v700, %v699
        %v710 = vpack.c.b16 %v702, %v701
        %719 = vmatprep.subr.bf16.mxu0 0
        %720 = vmatpush1.bf16.msra.mxu0 %v703
        %721 = vmatprep.subr.bf16.mxu0 0
        %722 = vmatpush1.bf16.msra.mxu0 %v704
        %723 = vmatprep.subr.bf16.mxu0 0
        %724 = vmatpush1.bf16.msra.mxu0 %v705
        %725 = vmatprep.subr.bf16.mxu0 0
        %726 = vmatpush1.bf16.msra.mxu0 %v706
        %727 = vmatprep.subr.bf16.mxu0 0
        %728 = vmatpush1.bf16.msra.mxu0 %v707
        %729 = vmatprep.subr.bf16.mxu0 0
        %730 = vmatpush1.bf16.msra.mxu0 %v708
        %731 = vmatprep.subr.bf16.mxu0 0
        %732 = vmatpush1.bf16.msra.mxu0 %v709
        %733 = vmatprep.subr.bf16.mxu0 0
        %734 = vmatpush1.bf16.msra.mxu0 %v710
        %735 = vmatprep.subr.bf16.mxu0 0
        %736 = vmatpush1.bf16.msra.mxu0 0
        %737 = vmatprep.subr.bf16.mxu0 0
        %738 = vmatpush1.bf16.msra.mxu0 0
        %739 = vmatprep.subr.bf16.mxu0 0
        %740 = vmatpush1.bf16.msra.mxu0 0
        %741 = vmatprep.subr.bf16.mxu0 0
        %742 = vmatpush1.bf16.msra.mxu0 0
        %743 = vmatprep.subr.bf16.mxu0 0
        %744 = vmatpush1.bf16.msra.mxu0 0
        %745 = vmatprep.subr.bf16.mxu0 0
        %746 = vmatpush1.bf16.msra.mxu0 0
        %747 = vmatprep.subr.bf16.mxu0 0
        %748 = vmatpush1.bf16.msra.mxu0 0
        %749 = vmatprep.subr.bf16.mxu0 0
        %750 = vmatpush1.bf16.msra.mxu0 0
        %751 = vmatprep.mubr.bf16.mxu0 0
        %752 = vmatmul.mubr.bf16.gmra.mrb[0].mxu0 %v654
        %v753 = vpop.f32.mrb[0].mxu0
        %v754 = vadd.f32 0.0, %v753
        %v755 = vpop.f32.mrb[0].mxu0
        %v756 = vpop.f32.mrb[0].mxu0
        %v757 = vpop.f32.mrb[0].mxu0
        %758 = vdwg.mxu0
        %759 = vadd.xlane.f32.xlu0 %v509
        %v760 = vpop.xlane.xlu0 %759
        %v761 = vmul.f32 %v760, %v512
        %v762 = vsub.f32 %v509, %v761
        %v763 = vmul.f32 %v762, %v762
        %764 = vadd.xlane.f32.xlu0 %v763
        %v765 = vpop.xlane.xlu0 %764
        %v766 = vmul.f32 %v765, %v512
        %v767 = vadd.f32 %v766, 1e-05
        %v768 = vrsqrt.pop %v767
        %v769 = vmul.f32 %v762, %v768
        %v770 = vmul.f32 %v769, %v526
        %v771 = vadd.f32 %v770, %v533
        %v772 = vpack.c.bf16 %v771, %v771
        %v773 = vld [vmem:[#allocation12] sm:$0xf]
        %v774 = vld [vmem:[#allocation12 + $0x4] sm:$0xf]
        %v775 = vld [vmem:[#allocation12 + $0x8] sm:$0xf]
        %v776 = vld [vmem:[#allocation12 + $0xc] sm:$0xf]
        %v777 = vld [vmem:[#allocation12 + $0x10] sm:$0xf]
        %v778 = vld [vmem:[#allocation12 + $0x14] sm:$0xf]
        %v779 = vld [vmem:[#allocation12 + $0x18] sm:$0xf]
        %v780 = vld [vmem:[#allocation12 + $0x1c] sm:$0xf]
        %v781 = vld [vmem:[#allocation12 + $0x20] sm:$0xf]
        %v782 = vld [vmem:[#allocation12 + $0x24] sm:$0xf]
        %v783 = vld [vmem:[#allocation12 + $0x28] sm:$0xf]
        %v784 = vld [vmem:[#allocation12 + $0x2c] sm:$0xf]
        %v785 = vld [vmem:[#allocation12 + $0x30] sm:$0xf]
        %v786 = vld [vmem:[#allocation12 + $0x34] sm:$0xf]
        %v787 = vld [vmem:[#allocation12 + $0x38] sm:$0xf]
        %v788 = vld [vmem:[#allocation12 + $0x3c] sm:$0xf]
        %v805 = vunpack.c.l.b16 %v773
        %v806 = vunpack.c.l.b16 %v774
        %v807 = vunpack.c.l.b16 %v775
        %v808 = vunpack.c.l.b16 %v776
        %v809 = vunpack.c.l.b16 %v777
        %v810 = vunpack.c.l.b16 %v778
        %v811 = vunpack.c.l.b16 %v779
        %v812 = vunpack.c.l.b16 %v780
        %v813 = vunpack.c.l.b16 %v781
        %v814 = vunpack.c.l.b16 %v782
        %v815 = vunpack.c.l.b16 %v783
        %v816 = vunpack.c.l.b16 %v784
        %v817 = vunpack.c.l.b16 %v785
        %v818 = vunpack.c.l.b16 %v786
        %v819 = vunpack.c.l.b16 %v787
        %v820 = vunpack.c.l.b16 %v788
        %v821 = vpack.c.b16 %v806, %v805
        %v822 = vpack.c.b16 %v808, %v807
        %v823 = vpack.c.b16 %v810, %v809
        %v824 = vpack.c.b16 %v812, %v811
        %v825 = vpack.c.b16 %v814, %v813
        %v826 = vpack.c.b16 %v816, %v815
        %v827 = vpack.c.b16 %v818, %v817
        %v828 = vpack.c.b16 %v820, %v819
        %837 = vmatprep.subr.bf16.mxu0 0
        %838 = vmatpush1.bf16.msra.mxu0 %v821
        %839 = vmatprep.subr.bf16.mxu0 0
        %840 = vmatpush1.bf16.msra.mxu0 %v822
        %841 = vmatprep.subr.bf16.mxu0 0
        %842 = vmatpush1.bf16.msra.mxu0 %v823
        %843 = vmatprep.subr.bf16.mxu0 0
        %844 = vmatpush1.bf16.msra.mxu0 %v824
        %845 = vmatprep.subr.bf16.mxu0 0
        %846 = vmatpush1.bf16.msra.mxu0 %v825
        %847 = vmatprep.subr.bf16.mxu0 0
        %848 = vmatpush1.bf16.msra.mxu0 %v826
        %849 = vmatprep.subr.bf16.mxu0 0
        %850 = vmatpush1.bf16.msra.mxu0 %v827
        %851 = vmatprep.subr.bf16.mxu0 0
        %852 = vmatpush1.bf16.msra.mxu0 %v828
        %853 = vmatprep.subr.bf16.mxu0 0
        %854 = vmatpush1.bf16.msra.mxu0 0
        %855 = vmatprep.subr.bf16.mxu0 0
        %856 = vmatpush1.bf16.msra.mxu0 0
        %857 = vmatprep.subr.bf16.mxu0 0
        %858 = vmatpush1.bf16.msra.mxu0 0
        %859 = vmatprep.subr.bf16.mxu0 0
        %860 = vmatpush1.bf16.msra.mxu0 0
        %861 = vmatprep.subr.bf16.mxu0 0
        %862 = vmatpush1.bf16.msra.mxu0 0
        %863 = vmatprep.subr.bf16.mxu0 0
        %864 = vmatpush1.bf16.msra.mxu0 0
        %865 = vmatprep.subr.bf16.mxu0 0
        %866 = vmatpush1.bf16.msra.mxu0 0
        %867 = vmatprep.subr.bf16.mxu0 0
        %868 = vmatpush1.bf16.msra.mxu0 0
        %869 = vmatprep.mubr.bf16.mxu0 0
        %870 = vmatmul.mubr.bf16.gmra.mrb[0].mxu0 %v772
        %v871 = vpop.f32.mrb[0].mxu0
        %v872 = vadd.f32 0.0, %v871
        %v873 = vpop.f32.mrb[0].mxu0
        %v874 = vpop.f32.mrb[0].mxu0
        %v875 = vpop.f32.mrb[0].mxu0
        %876 = vdwg.mxu0
        %v877 = vpack.c.bf16 %v636, %v636
        %v878 = vpack.c.bf16 %v754, %v754
        %v879 = vpack.c.bf16 %v872, %v872
        %880 = vmatprep.subr.bf16.mxu0 0
        %881 = vmatpush1.bf16.xpose.msra.mxu0 %v878
        %882 = vmatprep.subr.bf16.mxu0 0
        %883 = vmatpush1.bf16.xpose.msra.mxu0 0
        %884 = vmatprep.subr.bf16.mxu0 0
        %885 = vmatpush1.bf16.xpose.msra.mxu0 0
        %886 = vmatprep.subr.bf16.mxu0 0
        %887 = vmatpush1.bf16.xpose.msra.mxu0 0
        %888 = vmatprep.subr.bf16.mxu0 0
        %889 = vmatpush1.bf16.xpose.msra.mxu0 0
        %890 = vmatprep.subr.bf16.mxu0 0
        %891 = vmatpush1.bf16.xpose.msra.mxu0 0
        %892 = vmatprep.subr.bf16.mxu0 0
        %893 = vmatpush1.bf16.xpose.msra.mxu0 0
        %894 = vmatprep.subr.bf16.mxu0 0
        %895 = vmatpush1.bf16.xpose.msra.mxu0 0
        %896 = vmatprep.subr.bf16.mxu0 0
        %897 = vmatpush1.bf16.xpose.msra.mxu0 0
        %898 = vmatprep.subr.bf16.mxu0 0
        %899 = vmatpush1.bf16.xpose.msra.mxu0 0
        %900 = vmatprep.subr.bf16.mxu0 0
        %901 = vmatpush1.bf16.xpose.msra.mxu0 0
        %902 = vmatprep.subr.bf16.mxu0 0
        %903 = vmatpush1.bf16.xpose.msra.mxu0 0
        %904 = vmatprep.subr.bf16.mxu0 0
        %905 = vmatpush1.bf16.xpose.msra.mxu0 0
        %906 = vmatprep.subr.bf16.mxu0 0
        %907 = vmatpush1.bf16.xpose.msra.mxu0 0
        %908 = vmatprep.subr.bf16.mxu0 0
        %909 = vmatpush1.bf16.xpose.msra.mxu0 0
        %910 = vmatprep.subr.bf16.mxu0 0
        %911 = vmatpush1.bf16.xpose.msra.mxu0 0
        %912 = vmatprep.mubr.bf16.mxu0 0
        %913 = vmatmul.mubr.bf16.gmra.mrb[0].mxu0 %v877
        %v914 = vpop.f32.mrb[0].mxu0
        %v915 = vadd.f32 0.0, %v914
        %v916 = vpop.f32.mrb[0].mxu0
        %v917 = vpop.f32.mrb[0].mxu0
        %v918 = vpop.f32.mrb[0].mxu0
        %919 = vdwg.mxu0
        %vm920 = vcmask 64512
        %v921 = vsel %vm920, %v915, -inf
        %922 = vmax.xlane.f32.xlu0 %v921
        %v923 = vpop.xlane.xlu0 %922
        %v924 = vsub.f32 %v915, %v923
        %v925 = vmul.f32 %v924, 1.442695
        %v926 = vpow.pop %v925
        %v927 = vsel %vm920, %v926, 0.0
        %928 = vadd.xlane.f32.xlu0 %v927
        %v929 = vpop.xlane.xlu0 %928
        %v930 = vrcp.pop %v929
        %v931 = vmul.f32 %v926, %v930
        %v932 = vpack.c.bf16 %v931, %v931
        %v934 = vsel %vm920, %v932, 0
        %vm936 = vcmask 1043456
        %v938 = vsel %vm936, %v879, 0
        %940 = vmatprep.subr.bf16.mxu0 0
        %941 = vmatpush1.bf16.msra.mxu0 %v938
        %942 = vmatprep.subr.bf16.mxu0 0
        %943 = vmatpush1.bf16.msra.mxu0 0
        %944 = vmatprep.subr.bf16.mxu0 0
        %945 = vmatpush1.bf16.msra.mxu0 0
        %946 = vmatprep.subr.bf16.mxu0 0
        %947 = vmatpush1.bf16.msra.mxu0 0
        %948 = vmatprep.subr.bf16.mxu0 0
        %949 = vmatpush1.bf16.msra.mxu0 0
        %950 = vmatprep.subr.bf16.mxu0 0
        %951 = vmatpush1.bf16.msra.mxu0 0
        %952 = vmatprep.subr.bf16.mxu0 0
        %953 = vmatpush1.bf16.msra.mxu0 0
        %954 = vmatprep.subr.bf16.mxu0 0
        %955 = vmatpush1.bf16.msra.mxu0 0
        %956 = vmatprep.subr.bf16.mxu0 0
        %957 = vmatpush1.bf16.msra.mxu0 0
        %958 = vmatprep.subr.bf16.mxu0 0
        %959 = vmatpush1.bf16.msra.mxu0 0
        %960 = vmatprep.subr.bf16.mxu0 0
        %961 = vmatpush1.bf16.msra.mxu0 0
        %962 = vmatprep.subr.bf16.mxu0 0
        %963 = vmatpush1.bf16.msra.mxu0 0
        %964 = vmatprep.subr.bf16.mxu0 0
        %965 = vmatpush1.bf16.msra.mxu0 0
        %966 = vmatprep.subr.bf16.mxu0 0
        %967 = vmatpush1.bf16.msra.mxu0 0
        %968 = vmatprep.subr.bf16.mxu0 0
        %969 = vmatpush1.bf16.msra.mxu0 0
        %970 = vmatprep.subr.bf16.mxu0 0
        %971 = vmatpush1.bf16.msra.mxu0 0
        %972 = vmatprep.mubr.bf16.mxu0 0
        %973 = vmatmul.mubr.bf16.gmra.mrb[0].mxu0 %v934
        %v974 = vpop.f32.mrb[0].mxu0
        %v975 = vadd.f32 0.0, %v974
        %v976 = vpop.f32.mrb[0].mxu0
        %v977 = vpop.f32.mrb[0].mxu0
        %v978 = vpop.f32.mrb[0].mxu0
        %979 = vdwg.mxu0
        %980 = vst [vmem:[#allocation2] sm:$0xff] %v975
        %v981 = vld [vmem:[#allocation2] sm:$0xff]
        %v982 = vpack.c.bf16 %v981, %v981
        %v983 = vld [vmem:[#allocation14] sm:$0xf]
        %v984 = vld [vmem:[#allocation14 + $0x4] sm:$0xf]
        %v985 = vld [vmem:[#allocation14 + $0x8] sm:$0xf]
        %v986 = vld [vmem:[#allocation14 + $0xc] sm:$0xf]
        %v987 = vld [vmem:[#allocation14 + $0x10] sm:$0xf]
        %v988 = vld [vmem:[#allocation14 + $0x14] sm:$0xf]
        %v989 = vld [vmem:[#allocation14 + $0x18] sm:$0xf]
        %v990 = vld [vmem:[#allocation14 + $0x1c] sm:$0xf]
        %v991 = vld [vmem:[#allocation14 + $0x20] sm:$0xf]
        %v992 = vld [vmem:[#allocation14 + $0x24] sm:$0xf]
        %v993 = vld [vmem:[#allocation14 + $0x28] sm:$0xf]
        %v994 = vld [vmem:[#allocation14 + $0x2c] sm:$0xf]
        %v995 = vld [vmem:[#allocation14 + $0x30] sm:$0xf]
        %v996 = vld [vmem:[#allocation14 + $0x34] sm:$0xf]
        %v997 = vld [vmem:[#allocation14 + $0x38] sm:$0xf]
        %v998 = vld [vmem:[#allocation14 + $0x3c] sm:$0xf]
        %v999 = vld [vmem:[%s9] sm:$0x1]
        %v1001 = vlaneseq
        %v1002 = vshrl.u32 %v1001, 7
        %v1003 = vsub.s32 0, %v1002
        %v1004 = vrot.slane %v999, %v1003
        %v1022 = vunpack.c.l.b16 %v983
        %v1023 = vunpack.c.l.b16 %v984
        %v1024 = vunpack.c.l.b16 %v985
        %v1025 = vunpack.c.l.b16 %v986
        %v1026 = vunpack.c.l.b16 %v987
        %v1027 = vunpack.c.l.b16 %v988
        %v1028 = vunpack.c.l.b16 %v989
        %v1029 = vunpack.c.l.b16 %v990
        %v1030 = vunpack.c.l.b16 %v991
        %v1031 = vunpack.c.l.b16 %v992
        %v1032 = vunpack.c.l.b16 %v993
        %v1033 = vunpack.c.l.b16 %v994
        %v1034 = vunpack.c.l.b16 %v995
        %v1035 = vunpack.c.l.b16 %v996
        %v1036 = vunpack.c.l.b16 %v997
        %v1037 = vunpack.c.l.b16 %v998
        %v1038 = vpack.c.b16 %v1023, %v1022
        %v1039 = vpack.c.b16 %v1025, %v1024
        %v1040 = vpack.c.b16 %v1027, %v1026
        %v1041 = vpack.c.b16 %v1029, %v1028
        %v1042 = vpack.c.b16 %v1031, %v1030
        %v1043 = vpack.c.b16 %v1033, %v1032
        %v1044 = vpack.c.b16 %v1035, %v1034
        %v1045 = vpack.c.b16 %v1037, %v1036
        %1054 = vmatprep.subr.bf16.mxu0 0
        %1055 = vmatpush1.bf16.msra.mxu0 %v1038
        %1056 = vmatprep.subr.bf16.mxu0 0
        %1057 = vmatpush1.bf16.msra.mxu0 %v1039
        %1058 = vmatprep.subr.bf16.mxu0 0
        %1059 = vmatpush1.bf16.msra.mxu0 %v1040
        %1060 = vmatprep.subr.bf16.mxu0 0
        %1061 = vmatpush1.bf16.msra.mxu0 %v1041
        %1062 = vmatprep.subr.bf16.mxu0 0
        %1063 = vmatpush1.bf16.msra.mxu0 %v1042
        %1064 = vmatprep.subr.bf16.mxu0 0
        %1065 = vmatpush1.bf16.msra.mxu0 %v1043
        %1066 = vmatprep.subr.bf16.mxu0 0
        %1067 = vmatpush1.bf16.msra.mxu0 %v1044
        %1068 = vmatprep.subr.bf16.mxu0 0
        %1069 = vmatpush1.bf16.msra.mxu0 %v1045
        %1070 = vmatprep.subr.bf16.mxu0 0
        %1071 = vmatpush1.bf16.msra.mxu0 0
        %1072 = vmatprep.subr.bf16.mxu0 0
        %1073 = vmatpush1.bf16.msra.mxu0 0
        %1074 = vmatprep.subr.bf16.mxu0 0
        %1075 = vmatpush1.bf16.msra.mxu0 0
        %1076 = vmatprep.subr.bf16.mxu0 0
        %1077 = vmatpush1.bf16.msra.mxu0 0
        %1078 = vmatprep.subr.bf16.mxu0 0
        %1079 = vmatpush1.bf16.msra.mxu0 0
        %1080 = vmatprep.subr.bf16.mxu0 0
        %1081 = vmatpush1.bf16.msra.mxu0 0
        %1082 = vmatprep.subr.bf16.mxu0 0
        %1083 = vmatpush1.bf16.msra.mxu0 0
        %1084 = vmatprep.subr.bf16.mxu0 0
        %1085 = vmatpush1.bf16.msra.mxu0 0
        %1086 = vmatprep.mubr.bf16.mxu0 0
        %1087 = vmatmul.mubr.bf16.gmra.mrb[0].mxu0 %v982
        %v1088 = vpop.f32.mrb[0].mxu0
        %v1089 = vadd.f32 %v1004, %v1088
        %v1090 = vpop.f32.mrb[0].mxu0
        %v1091 = vpop.f32.mrb[0].mxu0
        %v1092 = vpop.f32.mrb[0].mxu0
        %1093 = vdwg.mxu0
        %v1094 = vadd.f32 %v1089, %v507
        %1095 = vst [vmem:[%s503] sm:$0xff] %v1094
        %s1096 = sand.u32 %s265, 1
        %s1097 = scalar_lea.sflag [#allocation5], %s1096
        %s1098 = sand.u32 %s265, 1
        %s1099 = smul.addr %s1098, 8
        %s1100 = scalar_lea.vmem [#allocation15], %s1099
        // Predicated region
        $region89: #{tpu_custom_call.1} parent=59 // pred_check
          %p1101 = pneg %p275
        $region90: #{tpu_custom_call.1} parent=59 // pred_check_branch
          %1103 = sbr.rel (%p1101) target = $region92
        $region91: #{tpu_custom_call.1} parent=59 // pred_region
          %s1105 = ssub.s32 128, 128
          %1106 = vsyncadd %s1097, %s1105
          %s1107 = smul.addr %s32, 128
          %s1108 = scalar_lea.hbm %s10, %s1107
          %s1110 = sshll.u32 %s1100, 4
          %s1111 = int_to_ptr.vmem [resolvable:$true] %s1110
          %1113 = dma.vmem_to_hbm [thread:$0]  %s1111, 128, %s1108, %s1097
        $region92: #{tpu_custom_call.1} parent=59 // pred_fallthru
          _
      $region60: #{tpu_custom_call.1} parent=5 // pred_fallthru
        _
      %p1114 = scmp.le.s32.totalorder 2, %s27
      // Predicated region
      $region93: #{tpu_custom_call.1} parent=5 // pred_check
        %p1115 = pneg %p1114
      $region94: #{tpu_custom_call.1} parent=5 // pred_check_branch
        %1117 = sbr.rel (%p1115) target = $region96
      $region95: #{tpu_custom_call.1} parent=5 // pred_region
        %s1118 = ssub.s32 %s27, 2
        // Predicated region
        $region97: #{tpu_custom_call.1} parent=95 // pred_check
          %p1119 = pneg %p281
        $region98: #{tpu_custom_call.1} parent=95 // pred_check_branch
          %1121 = sbr.rel (%p1119) target = $region100
        $region99: #{tpu_custom_call.1} parent=95 // pred_region
          %s1122 = sand.u32 %s266, 1
          %s1123 = scalar_lea.sflag [#allocation5], %s1122
          %s1124 = sand.u32 %s266, 1
          %s1125 = smul.addr %s1124, 8
          %s1126 = scalar_lea.vmem [#allocation15], %s1125
          %1127 = dma.done %s1123, 128
        $region100: #{tpu_custom_call.1} parent=95 // pred_fallthru
          _
      $region96: #{tpu_custom_call.1} parent=5 // pred_fallthru
        _
    $region6: #{tpu_custom_call.1} parent=1 // loop_footer
      %s31 = sadd.s32 1, %s27
    $region7: #{tpu_custom_call.1} parent=1 // loop_footer_branch
      %26 = sbr.rel target = $region3
    $region8: #{tpu_custom_call.1} parent=1 // loop_exit
      _
    %1128 = vsyncpa [#allocation4], 1
    %s1129 = scalar_lea.sflag [#allocation4], 1
    %1130 = vsyncpa %s1129, 1
    %1131 = vsyncpa [#allocation7], 1
    %s1132 = scalar_lea.sflag [#allocation7], 1
    %1133 = vsyncpa %s1132, 1
    %1134 = vsyncpa [#allocation10], 1
    %1135 = vsyncpa [#allocation13], 1
    %1136 = vsyncpa [#allocation5], 1
    %s1137 = scalar_lea.sflag [#allocation5], 1
    %1138 = vsyncpa %s1137, 1

</llo_original>
